<compile_context>
chip_gen: v5e
topology: v5e:2x2
jax: 0.10.0
libtpu: 0.0.40
codegen_flags: <defaults>
</compile_context>

<pallas_src>
import jax
import jax.numpy as jnp
import numpy as np
from jax.experimental import pallas as pl
from jax.experimental.pallas import tpu as pltpu


def _round_up(x, m):
    return (x + m - 1) // m * m


def _separator_kernel(batch_ref,     # [1, tile_n] int32 segment ids (pad rows -> num_graphs)
                      xfeat_ref,     # [tile_n, d_in]  node features for rationale_gnn_node
                      hnode_ref,     # [tile_n, d_in]  h_node
                      w_gnn_ref,     # [d_in, h_pad]
                      b_gnn_ref,     # [1, h_pad]
                      w_gate_ref,    # [1, h_pad]   (gate weight as a row)
                      b_gate_ref,    # [1, 1]
                      w_nn_ref,      # [d_in, d_pad]  (columns zero-padded to 128-lane group)
                      b_nn_ref,      # [1, d_pad]
                      out_ref,       # [1, B, slab_w] per-core lane-dense accumulator slab
                      rhs_ref,       # scratch [tile_n, slab_w] combined reduction RHS
                      gid_ref):      # scratch [B, tile_n] cached graph-id iota (int32)
    f32 = jnp.float32
    tile_n = xfeat_ref.shape[0]
    d_pad = w_nn_ref.shape[1]
    c_scal = 2 * d_pad                   # start of the 128-lane scalar column group
    step = pl.program_id(1)

    @pl.when(step == 0)
    def _init():
        out_ref[...] = jnp.zeros_like(out_ref)
        # Constant across steps: cache the [B, tile_n] graph-id iota once per core.
        gid_ref[...] = jax.lax.broadcasted_iota(jnp.int32, gid_ref.shape, 0)

    # --- rationale_gnn_node(batched_data)[0]  (synthetic Linear + ReLU) ------
    x = jnp.dot(xfeat_ref[...], w_gnn_ref[...], preferred_element_type=f32)
    x = jnp.maximum(x + b_gnn_ref[...], 0.0)

    # --- gate = sigmoid(gate_nn(x)): width-1 matmul as VPU mul + lane reduce -
    gate_logits = jnp.sum(x * w_gate_ref[...], axis=-1, keepdims=True) + b_gate_ref[...]
    gate = jax.nn.sigmoid(gate_logits)                                  # [tile_n, 1]

    # --- h_node = nn(h_node)  (weights column-padded to d_pad lanes) ---------
    h = jnp.dot(hnode_ref[...], w_nn_ref[...], preferred_element_type=f32) + b_nn_ref[...]

    # --- lane-dense staging of all six segment-reduced quantities ------------
    rhs_ref[:, 0:d_pad] = gate * h                    # -> h_out
    rhs_ref[:, d_pad:c_scal] = (1.0 - gate) * h       # -> c_out (direct, no cancellation)
    lane = jax.lax.broadcasted_iota(jnp.int32, (tile_n, 128), 1)
    scal = (jnp.where(lane == 0, gate, 0.0)                        # -> r_node_num
            + jnp.where(lane == 1, 1.0 - gate, 0.0)                # -> env_node_num
            + jnp.where(lane == 2, (gate > 0.0).astype(f32), 0.0)  # -> non_zero count
            + (lane == 3).astype(f32))                             # -> node count
    rhs_ref[:, c_scal:c_scal + 128] = scal            # single unmasked 128-lane store

    # --- every scatter_add as one MXU pass ------------------------------------
    onehot = (gid_ref[...] == batch_ref[...]).astype(f32)          # [B, tile_n]
    part = jnp.dot(onehot, rhs_ref[...], preferred_element_type=f32)
    out_ref[...] = out_ref[...] + part[None, :, :]


def separator_forward(batch, node_feat, h_node, params, num_graphs, *, num_cores=2):
    """Runs the separator forward pass in a single tiled Pallas kernel.

    Returns (h_out, c_out, r_node_num, env_node_num, non_zero_node_ratio).
    """
    n_nodes, d_in = h_node.shape
    hdim = params["w_gnn"].shape[1]
    f32 = jnp.float32

    d_pad = _round_up(d_in, 128)     # lane-padded width of h / output column groups
    h_pad = _round_up(hdim, 128)     # lane-padded hidden dim
    slab_w = 2 * d_pad + 128         # h_out | c_out | scalar group

    # Node-tile size: biggest lane-aligned tile whose double-buffered working
    # set stays comfortably inside VMEM on all generations (v7x has 64 MiB/TC).
    tile_n = min(1024, _round_up(max(n_nodes, 1), 128))
    while tile_n > 128 and 4 * (4 * tile_n * (2 * d_in + 1) + tile_n * slab_w) > (28 << 20):
        tile_n //= 2

    total_tiles = pl.cdiv(n_nodes, tile_n)
    tiles_per_core = pl.cdiv(total_tiles, num_cores)
    n_pad = num_cores * tiles_per_core * tile_n
    pad = n_pad - n_nodes

    # Pad nodes; out-of-range segment id (num_graphs) contributes to no graph.
    batch_p = jnp.pad(batch.astype(jnp.int32).reshape(1, n_nodes),
                      ((0, 0), (0, pad)), constant_values=num_graphs)
    xfeat_p = jnp.pad(node_feat.astype(f32), ((0, pad), (0, 0)))
    hnode_p = jnp.pad(h_node.astype(f32), ((0, pad), (0, 0)))

    # Lane-pad the weights so the in-kernel stores are unmasked and full width.
    w_gnn = jnp.pad(params["w_gnn"].astype(f32), ((0, 0), (0, h_pad - hdim)))
    b_gnn = jnp.pad(params["b_gnn"].astype(f32).reshape(1, hdim), ((0, 0), (0, h_pad - hdim)))
    w_gate = jnp.pad(params["w_gate"].astype(f32).reshape(1, hdim), ((0, 0), (0, h_pad - hdim)))
    b_gate = params["b_gate"].astype(f32).reshape(1, 1)
    w_nn = jnp.pad(params["w_nn"].astype(f32), ((0, 0), (0, d_pad - d_in)))
    b_nn = jnp.pad(params["b_nn"].astype(f32).reshape(1, d_in), ((0, 0), (0, d_pad - d_in)))

    node_map = lambda c, i: (c * tiles_per_core + i, 0)
    batch_map = lambda c, i: (0, c * tiles_per_core + i)
    const_map = lambda c, i: (0, 0)

    grid_spec = pltpu.PrefetchScalarGridSpec(
        num_scalar_prefetch=0,
        grid=(num_cores, tiles_per_core),
        in_specs=[
            pl.BlockSpec((1, tile_n), batch_map),        # segment ids
            pl.BlockSpec((tile_n, d_in), node_map),      # node features
            pl.BlockSpec((tile_n, d_in), node_map),      # h_node
            pl.BlockSpec((d_in, h_pad), const_map),      # w_gnn
            pl.BlockSpec((1, h_pad), const_map),         # b_gnn
            pl.BlockSpec((1, h_pad), const_map),         # w_gate (row)
            pl.BlockSpec((1, 1), const_map),             # b_gate
            pl.BlockSpec((d_in, d_pad), const_map),      # w_nn
            pl.BlockSpec((1, d_pad), const_map),         # b_nn
        ],
        out_specs=pl.BlockSpec((1, num_graphs, slab_w), lambda c, i: (c, 0, 0)),
        scratch_shapes=[
            pltpu.VMEM((tile_n, slab_w), jnp.float32),    # staged reduction RHS
            pltpu.VMEM((num_graphs, tile_n), jnp.int32),  # cached graph-id iota
        ],
    )

    # Advisory cost hint for XLA's scheduler around the custom call.
    flops = (2 * n_pad * d_in * h_pad + 2 * n_pad * h_pad
             + 2 * n_pad * d_in * d_pad + 2 * num_graphs * n_pad * slab_w)
    bytes_accessed = 4 * (n_pad * (2 * d_in + 1)
                          + d_in * (h_pad + d_pad) + 3 * h_pad + 2 * d_pad + 1
                          + num_cores * num_graphs * slab_w)
    cost = pl.CostEstimate(flops=flops, transcendentals=n_pad,
                           bytes_accessed=bytes_accessed)

    # Working set: double-buffered node streams + weights + scratch + temporaries.
    work = 4 * (4 * tile_n * (2 * d_in + 1)                   # pipelined input tiles (x2 buf)
                + tile_n * (h_pad + d_pad + slab_w + 128)     # x, h, rhs scratch, scal
                + num_graphs * (2 * tile_n + slab_w)          # onehot + gid cache + out slab
                + d_in * (h_pad + d_pad) + 3 * h_pad + 2 * d_pad + 2)
    vmem_limit = int(min(max(work + (4 << 20), 16 << 20), 48 << 20))

    slab = pl.pallas_call(
        _separator_kernel,
        out_shape=jax.ShapeDtypeStruct((num_cores, num_graphs, slab_w), jnp.float32),
        grid_spec=grid_spec,
        compiler_params=pltpu.CompilerParams(
            dimension_semantics=("parallel", "arbitrary"),
            vmem_limit_bytes=vmem_limit,
        ),
        cost_estimate=cost,
    )(batch_p, xfeat_p, hnode_p, w_gnn, b_gnn, w_gate, b_gate, w_nn, b_nn)

    # Combine per-core partial sums and finalize (tiny [B, slab_w] XLA epilogue).
    slab = jnp.sum(slab, axis=0)
    base = 2 * d_pad
    h_out = slab[:, 0:d_in]
    c_out = slab[:, d_pad:d_pad + d_in]
    r_num = slab[:, base:base + 1] + 1e-8
    env_num = slab[:, base + 1:base + 2] + 1e-8
    ratio = slab[:, base + 2:base + 3] / slab[:, base + 3:base + 4]
    return h_out, c_out, r_num, env_num, ratio


def _reference(batch, node_feat, h_node, params, num_graphs):
    x = jnp.maximum(node_feat @ params["w_gnn"] + params["b_gnn"], 0.0)
    gate = jax.nn.sigmoid(x @ params["w_gate"] + params["b_gate"])   # [N,1]
    h = h_node @ params["w_nn"] + params["b_nn"]
    seg = batch.astype(jnp.int32)
    sadd = lambda v: jax.ops.segment_sum(v, seg, num_segments=num_graphs)
    h_out = sadd(gate * h)
    c_out = sadd((1.0 - gate) * h)
    r_num = sadd(gate) + 1e-8
    env_num = sadd(1.0 - gate) + 1e-8
    ratio = sadd((gate > 0).astype(jnp.float32)) / sadd(jnp.ones_like(gate))
    return h_out, c_out, r_num, env_num, ratio


if __name__ == "__main__":
    key = jax.random.PRNGKey(0)
    k1, k2, k3, k4, k5 = jax.random.split(key, 5)

    N = 32          # total nodes in the batch
    D_IN = 32       # h_node / raw node-feature dim
    H = 32          # hidden dim of rationale_gnn_node output
    B = 4           # number of graphs (size = batch[-1] + 1)

    # Snap test data to the bf16 grid so any MXU bf16-pass rounding of raw
    # operands is lossless; the tolerance then only absorbs pass-count /
    # accumulation-order differences between the kernel and the XLA reference.
    snap = lambda a: a.astype(jnp.bfloat16).astype(jnp.float32)

    params = {
        "w_gnn": snap(jax.random.normal(k1, (D_IN, H), jnp.float32) * 0.1),
        "b_gnn": jnp.zeros((1, H), jnp.float32),
        "w_gate": snap(jax.random.normal(k2, (H, 1), jnp.float32) * 0.1),
        "b_gate": jnp.zeros((1, 1), jnp.float32),
        "w_nn": snap(jax.random.normal(k3, (D_IN, D_IN), jnp.float32) * 0.1),
        "b_nn": jnp.zeros((1, D_IN), jnp.float32),
    }

    node_feat = snap(jax.random.normal(k4, (N, D_IN), jnp.float32))
    h_node = snap(jax.random.normal(k5, (N, D_IN), jnp.float32))
    batch = jnp.repeat(jnp.arange(B, dtype=jnp.int32), N // B)   # sorted segment ids

    outs = separator_forward(batch, node_feat, h_node, params, B)
    outs = jax.block_until_ready(outs)

    refs = _reference(batch, node_feat, h_node, params, B)
    for o, r in zip(outs, refs):
        np.testing.assert_allclose(np.asarray(o), np.asarray(r), rtol=5e-3, atol=5e-3)

    print("KERNEL_OK")
</pallas_src>

<mosaic_0001>
module attributes {stable_mosaic.version = 11 : i64} {
  func.func @_separator_kernel(%arg0: i32, %arg1: i32, %arg2: memref<1x128xi32, #tpu.memory_space<vmem>>, %arg3: memref<128x32xf32, #tpu.memory_space<vmem>>, %arg4: memref<128x32xf32, #tpu.memory_space<vmem>>, %arg5: memref<32x128xf32, #tpu.memory_space<vmem>>, %arg6: memref<1x128xf32, #tpu.memory_space<vmem>>, %arg7: memref<1x128xf32, #tpu.memory_space<vmem>>, %arg8: memref<1x1xf32, #tpu.memory_space<vmem>>, %arg9: memref<32x128xf32, #tpu.memory_space<vmem>>, %arg10: memref<1x128xf32, #tpu.memory_space<vmem>>, %arg11: memref<1x4x384xf32, #tpu.memory_space<vmem>>, %arg12: memref<128x384xf32, #tpu.memory_space<vmem>>, %arg13: memref<4x128xi32, #tpu.memory_space<vmem>>) attributes {dimension_semantics = [#tpu.dimension_semantics<parallel>, #tpu.dimension_semantics<arbitrary>], iteration_bounds = array<i64: 2, 1>, scalar_prefetch = 0 : i64, scratch_operands = 2 : i64, tpu.core_type = #tpu.core_type<tc>, window_params = [{transform_indices = @transform_0, window_bounds = array<i64: 1, 128>}, {transform_indices = @transform_1, window_bounds = array<i64: 128, 32>}, {transform_indices = @transform_2, window_bounds = array<i64: 128, 32>}, {pipeline_mode = #tpu.pipeline_mode<synchronous>, transform_indices = @transform_3, window_bounds = array<i64: 32, 128>}, {pipeline_mode = #tpu.pipeline_mode<synchronous>, transform_indices = @transform_4, window_bounds = array<i64: 1, 128>}, {pipeline_mode = #tpu.pipeline_mode<synchronous>, transform_indices = @transform_5, window_bounds = array<i64: 1, 128>}, {pipeline_mode = #tpu.pipeline_mode<synchronous>, transform_indices = @transform_6, window_bounds = array<i64: 1, 1>}, {pipeline_mode = #tpu.pipeline_mode<synchronous>, transform_indices = @transform_7, window_bounds = array<i64: 32, 128>}, {pipeline_mode = #tpu.pipeline_mode<synchronous>, transform_indices = @transform_8, window_bounds = array<i64: 1, 128>}, {transform_indices = @transform_9, window_bounds = array<i64: 1, 4, 384>}]} {
    %c0_i32 = arith.constant 0 : i32
    %0 = arith.cmpi eq, %arg1, %c0_i32 : i32
    %1 = arith.extui %0 : i1 to i32
    %c0_i32_0 = arith.constant 0 : i32
    %2 = arith.cmpi ne, %1, %c0_i32_0 : i32
    scf.if %2 {
      %cst_44 = arith.constant 0.000000e+00 : f32
      %83 = vector.broadcast %cst_44 : f32 to vector<1x4x384xf32>
      %c0_45 = arith.constant 0 : index
      %c0_46 = arith.constant 0 : index
      %c0_47 = arith.constant 0 : index
      %84 = vector.load %arg11[%c0_45, %c0_46, %c0_47] : memref<1x4x384xf32, #tpu.memory_space<vmem>>, vector<1x4x384xf32>
      tpu.vector_store %arg11[%c0_45, %c0_46, %c0_47], %83 {strides = array<i32>} : memref<1x4x384xf32, #tpu.memory_space<vmem>>, vector<1x4x384xf32>,
      %85 = tpu.iota {dimensions = array<i32: 0>} : vector<4x128xi32>
      %c0_48 = arith.constant 0 : index
      %c0_49 = arith.constant 0 : index
      %86 = vector.load %arg13[%c0_48, %c0_49] : memref<4x128xi32, #tpu.memory_space<vmem>>, vector<4x128xi32>
      tpu.vector_store %arg13[%c0_48, %c0_49], %85 {strides = array<i32>} : memref<4x128xi32, #tpu.memory_space<vmem>>, vector<4x128xi32>,
    } else {
    }
    %c0 = arith.constant 0 : index
    %c0_1 = arith.constant 0 : index
    %3 = vector.load %arg3[%c0, %c0_1] : memref<128x32xf32, #tpu.memory_space<vmem>>, vector<128x32xf32>
    %c0_2 = arith.constant 0 : index
    %c0_3 = arith.constant 0 : index
    %4 = vector.load %arg5[%c0_2, %c0_3] : memref<32x128xf32, #tpu.memory_space<vmem>>, vector<32x128xf32>
    %cst = arith.constant dense<0.000000e+00> : vector<128x128xf32>
    %5 = tpu.matmul %3, %4, %cst {dimension_numbers = #tpu.dot_dimension_numbers<[1], [0], [0], [1], [0, 0, 1, 1], [], []>} : vector<128x32xf32>, vector<32x128xf32>, vector<128x128xf32> -> vector<128x128xf32>
    %c0_4 = arith.constant 0 : index
    %c0_5 = arith.constant 0 : index
    %6 = vector.load %arg6[%c0_4, %c0_5] : memref<1x128xf32, #tpu.memory_space<vmem>>, vector<1x128xf32>
    %7 = vector.broadcast %6 : vector<1x128xf32> to vector<128x128xf32>
    %8 = arith.addf %5, %7 : vector<128x128xf32>
    %cst_6 = arith.constant 0.000000e+00 : f32
    %9 = vector.broadcast %cst_6 : f32 to vector<128x128xf32>
    %10 = arith.maximumf %8, %9 : vector<128x128xf32>
    %c0_7 = arith.constant 0 : index
    %c0_8 = arith.constant 0 : index
    %11 = vector.load %arg7[%c0_7, %c0_8] : memref<1x128xf32, #tpu.memory_space<vmem>>, vector<1x128xf32>
    %12 = vector.broadcast %11 : vector<1x128xf32> to vector<128x128xf32>
    %13 = arith.mulf %10, %12 : vector<128x128xf32>
    %cst_9 = arith.constant dense<0.000000e+00> : vector<128xf32>
    %14 = vector.multi_reduction <add>, %13, %cst_9 [1] : vector<128x128xf32> to vector<128xf32>
    %15 = vector.shape_cast %14 : vector<128xf32> to vector<128x1xf32>
    %c0_10 = arith.constant 0 : index
    %c0_11 = arith.constant 0 : index
    %16 = vector.load %arg8[%c0_10, %c0_11] : memref<1x1xf32, #tpu.memory_space<vmem>>, vector<1x1xf32>
    %17 = vector.broadcast %16 : vector<1x1xf32> to vector<128x1xf32>
    %18 = arith.addf %15, %17 : vector<128x1xf32>
    %19 = arith.negf %18 : vector<128x1xf32>
    %20 = math.exp %19 : vector<128x1xf32>
    %cst_12 = arith.constant 1.000000e+00 : f32
    %21 = vector.broadcast %cst_12 : f32 to vector<128x1xf32>
    %22 = arith.addf %21, %20 : vector<128x1xf32>
    %23 = arith.divf %21, %22 : vector<128x1xf32>
    %c0_13 = arith.constant 0 : index
    %c0_14 = arith.constant 0 : index
    %24 = vector.load %arg4[%c0_13, %c0_14] : memref<128x32xf32, #tpu.memory_space<vmem>>, vector<128x32xf32>
    %c0_15 = arith.constant 0 : index
    %c0_16 = arith.constant 0 : index
    %25 = vector.load %arg9[%c0_15, %c0_16] : memref<32x128xf32, #tpu.memory_space<vmem>>, vector<32x128xf32>
    %cst_17 = arith.constant dense<0.000000e+00> : vector<128x128xf32>
    %26 = tpu.matmul %24, %25, %cst_17 {dimension_numbers = #tpu.dot_dimension_numbers<[1], [0], [0], [1], [0, 0, 1, 1], [], []>} : vector<128x32xf32>, vector<32x128xf32>, vector<128x128xf32> -> vector<128x128xf32>
    %c0_18 = arith.constant 0 : index
    %c0_19 = arith.constant 0 : index
    %27 = vector.load %arg10[%c0_18, %c0_19] : memref<1x128xf32, #tpu.memory_space<vmem>>, vector<1x128xf32>
    %28 = vector.broadcast %27 : vector<1x128xf32> to vector<128x128xf32>
    %29 = arith.addf %26, %28 : vector<128x128xf32>
    %30 = vector.broadcast %23 : vector<128x1xf32> to vector<128x128xf32>
    %31 = arith.mulf %30, %29 : vector<128x128xf32>
    %c0_20 = arith.constant 0 : index
    %c0_21 = arith.constant 0 : index
    %32 = vector.load %arg12[%c0_20, %c0_21] : memref<128x384xf32, #tpu.memory_space<vmem>>, vector<128x128xf32>
    tpu.vector_store %arg12[%c0_20, %c0_21], %31 {strides = array<i32>} : memref<128x384xf32, #tpu.memory_space<vmem>>, vector<128x128xf32>,
    %cst_22 = arith.constant 1.000000e+00 : f32
    %33 = vector.broadcast %cst_22 : f32 to vector<128x1xf32>
    %34 = arith.subf %33, %23 : vector<128x1xf32>
    %35 = vector.broadcast %34 : vector<128x1xf32> to vector<128x128xf32>
    %36 = arith.mulf %35, %29 : vector<128x128xf32>
    %c0_23 = arith.constant 0 : index
    %c128 = arith.constant 128 : index
    %37 = vector.load %arg12[%c0_23, %c128] : memref<128x384xf32, #tpu.memory_space<vmem>>, vector<128x128xf32>
    tpu.vector_store %arg12[%c0_23, %c128], %36 {strides = array<i32>} : memref<128x384xf32, #tpu.memory_space<vmem>>, vector<128x128xf32>,
    %38 = tpu.iota {dimensions = array<i32: 1>} : vector<128x128xi32>
    %c0_i32_24 = arith.constant 0 : i32
    %39 = vector.broadcast %c0_i32_24 : i32 to vector<128x128xi32>
    %40 = arith.cmpi eq, %38, %39 : vector<128x128xi32>
    %cst_25 = arith.constant 0.000000e+00 : f32
    %41 = vector.shape_cast %23 : vector<128x1xf32> to vector<128x1xf32>
    %42 = vector.broadcast %41 : vector<128x1xf32> to vector<128x128xf32>
    %43 = vector.broadcast %cst_25 : f32 to vector<128x128xf32>
    %44 = arith.select %40, %42, %43 : vector<128x128xi1>, vector<128x128xf32>
    %c1_i32 = arith.constant 1 : i32
    %45 = vector.broadcast %c1_i32 : i32 to vector<128x128xi32>
    %46 = arith.cmpi eq, %38, %45 : vector<128x128xi32>
    %cst_26 = arith.constant 1.000000e+00 : f32
    %47 = vector.broadcast %cst_26 : f32 to vector<128x1xf32>
    %48 = arith.subf %47, %23 : vector<128x1xf32>
    %cst_27 = arith.constant 0.000000e+00 : f32
    %49 = vector.shape_cast %48 : vector<128x1xf32> to vector<128x1xf32>
    %50 = vector.broadcast %49 : vector<128x1xf32> to vector<128x128xf32>
    %51 = vector.broadcast %cst_27 : f32 to vector<128x128xf32>
    %52 = arith.select %46, %50, %51 : vector<128x128xi1>, vector<128x128xf32>
    %53 = arith.addf %44, %52 : vector<128x128xf32>
    %c2_i32 = arith.constant 2 : i32
    %54 = vector.broadcast %c2_i32 : i32 to vector<128x128xi32>
    %55 = arith.cmpi eq, %38, %54 : vector<128x128xi32>
    %cst_28 = arith.constant 0.000000e+00 : f32
    %56 = vector.broadcast %cst_28 : f32 to vector<128x1xf32>
    %57 = arith.cmpf ogt, %23, %56 : vector<128x1xf32>
    %58 = arith.extui %57 : vector<128x1xi1> to vector<128x1xi32>
    %59 = arith.sitofp %58 : vector<128x1xi32> to vector<128x1xf32>
    %cst_29 = arith.constant 0.000000e+00 : f32
    %60 = vector.shape_cast %59 : vector<128x1xf32> to vector<128x1xf32>
    %61 = vector.broadcast %60 : vector<128x1xf32> to vector<128x128xf32>
    %62 = vector.broadcast %cst_29 : f32 to vector<128x128xf32>
    %63 = arith.select %55, %61, %62 : vector<128x128xi1>, vector<128x128xf32>
    %64 = arith.addf %53, %63 : vector<128x128xf32>
    %c3_i32 = arith.constant 3 : i32
    %65 = vector.broadcast %c3_i32 : i32 to vector<128x128xi32>
    %66 = arith.cmpi eq, %38, %65 : vector<128x128xi32>
    %67 = arith.extui %66 : vector<128x128xi1> to vector<128x128xi32>
    %68 = arith.sitofp %67 : vector<128x128xi32> to vector<128x128xf32>
    %69 = arith.addf %64, %68 : vector<128x128xf32>
    %c0_30 = arith.constant 0 : index
    %c256 = arith.constant 256 : index
    %70 = vector.load %arg12[%c0_30, %c256] : memref<128x384xf32, #tpu.memory_space<vmem>>, vector<128x128xf32>
    tpu.vector_store %arg12[%c0_30, %c256], %69 {strides = array<i32>} : memref<128x384xf32, #tpu.memory_space<vmem>>, vector<128x128xf32>,
    %c0_31 = arith.constant 0 : index
    %c0_32 = arith.constant 0 : index
    %71 = vector.load %arg13[%c0_31, %c0_32] : memref<4x128xi32, #tpu.memory_space<vmem>>, vector<4x128xi32>
    %c0_33 = arith.constant 0 : index
    %c0_34 = arith.constant 0 : index
    %72 = vector.load %arg2[%c0_33, %c0_34] : memref<1x128xi32, #tpu.memory_space<vmem>>, vector<1x128xi32>
    %73 = vector.broadcast %72 : vector<1x128xi32> to vector<4x128xi32>
    %74 = arith.cmpi eq, %71, %73 : vector<4x128xi32>
    %75 = arith.extui %74 : vector<4x128xi1> to vector<4x128xi32>
    %76 = arith.sitofp %75 : vector<4x128xi32> to vector<4x128xf32>
    %c0_35 = arith.constant 0 : index
    %c0_36 = arith.constant 0 : index
    %77 = vector.load %arg12[%c0_35, %c0_36] : memref<128x384xf32, #tpu.memory_space<vmem>>, vector<128x384xf32>
    %cst_37 = arith.constant dense<0.000000e+00> : vector<4x384xf32>
    %78 = tpu.matmul %76, %77, %cst_37 {dimension_numbers = #tpu.dot_dimension_numbers<[1], [0], [0], [1], [0, 0, 1, 1], [], []>} : vector<4x128xf32>, vector<128x384xf32>, vector<4x384xf32> -> vector<4x384xf32>
    %c0_38 = arith.constant 0 : index
    %c0_39 = arith.constant 0 : index
    %c0_40 = arith.constant 0 : index
    %79 = vector.load %arg11[%c0_38, %c0_39, %c0_40] : memref<1x4x384xf32, #tpu.memory_space<vmem>>, vector<1x4x384xf32>
    %80 = vector.shape_cast %78 : vector<4x384xf32> to vector<1x4x384xf32>
    %81 = arith.addf %79, %80 : vector<1x4x384xf32>
    %c0_41 = arith.constant 0 : index
    %c0_42 = arith.constant 0 : index
    %c0_43 = arith.constant 0 : index
    %82 = vector.load %arg11[%c0_41, %c0_42, %c0_43] : memref<1x4x384xf32, #tpu.memory_space<vmem>>, vector<1x4x384xf32>
    tpu.vector_store %arg11[%c0_41, %c0_42, %c0_43], %81 {strides = array<i32>} : memref<1x4x384xf32, #tpu.memory_space<vmem>>, vector<1x4x384xf32>,
    return
  }
  func.func @transform_0(%arg0: i32, %arg1: i32) -> (i32, i32) {
    %c1_i32 = arith.constant 1 : i32
    %0 = arith.muli %arg0, %c1_i32 : i32
    %1 = arith.addi %0, %arg1 : i32
    %c0_i32 = arith.constant 0 : i32
    %c0_i32_0 = arith.constant 0 : i32
    return %c0_i32, %1 : i32, i32
  }
  func.func @transform_1(%arg0: i32, %arg1: i32) -> (i32, i32) {
    %c1_i32 = arith.constant 1 : i32
    %0 = arith.muli %arg0, %c1_i32 : i32
    %1 = arith.addi %0, %arg1 : i32
    %c0_i32 = arith.constant 0 : i32
    %c0_i32_0 = arith.constant 0 : i32
    return %1, %c0_i32 : i32, i32
  }
  func.func @transform_2(%arg0: i32, %arg1: i32) -> (i32, i32) {
    %c1_i32 = arith.constant 1 : i32
    %0 = arith.muli %arg0, %c1_i32 : i32
    %1 = arith.addi %0, %arg1 : i32
    %c0_i32 = arith.constant 0 : i32
    %c0_i32_0 = arith.constant 0 : i32
    return %1, %c0_i32 : i32, i32
  }
  func.func @transform_3(%arg0: i32, %arg1: i32) -> (i32, i32) {
    %c0_i32 = arith.constant 0 : i32
    %c0_i32_0 = arith.constant 0 : i32
    %c0_i32_1 = arith.constant 0 : i32
    return %c0_i32, %c0_i32_0 : i32, i32
  }
  func.func @transform_4(%arg0: i32, %arg1: i32) -> (i32, i32) {
    %c0_i32 = arith.constant 0 : i32
    %c0_i32_0 = arith.constant 0 : i32
    %c0_i32_1 = arith.constant 0 : i32
    return %c0_i32, %c0_i32_0 : i32, i32
  }
  func.func @transform_5(%arg0: i32, %arg1: i32) -> (i32, i32) {
    %c0_i32 = arith.constant 0 : i32
    %c0_i32_0 = arith.constant 0 : i32
    %c0_i32_1 = arith.constant 0 : i32
    return %c0_i32, %c0_i32_0 : i32, i32
  }
  func.func @transform_6(%arg0: i32, %arg1: i32) -> (i32, i32) {
    %c0_i32 = arith.constant 0 : i32
    %c0_i32_0 = arith.constant 0 : i32
    %c0_i32_1 = arith.constant 0 : i32
    return %c0_i32, %c0_i32_0 : i32, i32
  }
  func.func @transform_7(%arg0: i32, %arg1: i32) -> (i32, i32) {
    %c0_i32 = arith.constant 0 : i32
    %c0_i32_0 = arith.constant 0 : i32
    %c0_i32_1 = arith.constant 0 : i32
    return %c0_i32, %c0_i32_0 : i32, i32
  }
  func.func @transform_8(%arg0: i32, %arg1: i32) -> (i32, i32) {
    %c0_i32 = arith.constant 0 : i32
    %c0_i32_0 = arith.constant 0 : i32
    %c0_i32_1 = arith.constant 0 : i32
    return %c0_i32, %c0_i32_0 : i32, i32
  }
  func.func @transform_9(%arg0: i32, %arg1: i32) -> (i32, i32, i32) {
    %c0_i32 = arith.constant 0 : i32
    %c0_i32_0 = arith.constant 0 : i32
    %c0_i32_1 = arith.constant 0 : i32
    return %arg0, %c0_i32, %c0_i32_0 : i32, i32, i32
  }
}

</mosaic_0001>

<llo_original>
// kernel: tpu_custom_call.1
$region0: #{tpu_custom_call.1}
  #allocation0 [shape = 'u32[]', space=smem, size = 0x4, offset = 0x4, fixed_abs, tag = 'smem constant byte address 0x4 - core index']
  #allocation1 [shape = 'u32[72,128]{1,0:T(1,128)}', space=vmem, size = 0x9000, scoped, tag = 'internal scratch']
  #allocation2 [shape = 'f32[128,384]{1,0:T(8,128)}', space=vmem, size = 0x30000, scoped, tag = 'scratch operand']
  #allocation3 [shape = 's32[4,128]{1,0:T(4,128)}', space=vmem, size = 0x800, scoped, tag = 'scratch operand']
  #allocation4 [shape = 'f32[1,1]{1,0:T(1,128)S(1)}', space=vmem, size = 0x200, scoped, tag = 'scoped memory for tpu_custom_call.1']
  %s0 = inlined_call_operand.vmem [shape: s32[1,256], index: 0, kind: input, shape index: {}]
  %s1 = inlined_call_operand.vmem [shape: f32[256,32], index: 1, kind: input, shape index: {}]
  %s2 = inlined_call_operand.vmem [shape: f32[256,32], index: 2, kind: input, shape index: {}]
  %s3 = inlined_call_operand.vmem [shape: f32[32,128], index: 3, kind: input, shape index: {}]
  %s4 = inlined_call_operand.vmem [shape: f32[1,128], index: 4, kind: input, shape index: {}]
  %s5 = inlined_call_operand.vmem [shape: f32[1,128], index: 5, kind: input, shape index: {}]
  %s6 = inlined_call_operand.<no memory space> [shape: f32[1,1], index: 6, kind: input, shape index: {}]
  %s7 = inlined_call_operand.vmem [shape: f32[32,128], index: 7, kind: input, shape index: {}]
  %s8 = inlined_call_operand.vmem [shape: f32[1,128], index: 8, kind: input, shape index: {}]
  %s9 = inlined_call_operand.hbm [shape: f32[2,4,384], index: 9, kind: output, shape index: {}]
  %s10 = sld [smem:[#allocation0]]
  $region73: #{tpu_custom_call.1} parent=0
    _
  %s12 = ssub.s32 1, %s10
  %s13 = scalar_select 0, %s12, %s10
  %v14 = vstv %s6
  %15 = vst [vmem:[#allocation4] sm:$0x1] %v14
  $region1: #{tpu_custom_call.1} parent=0
    #allocation5 [shape = 'u8[12288]{0}', space=vmem, size = 0x3000, scoped, tag = 'output window, operand 0']
    #allocation6 [shape = 's32[2]{0}', space=sflag, size = 0x8, scoped, tag = 'scoped memory for tpu_custom_call.1']
    %16 = vsyncpa [#allocation6], 0
    %s17 = scalar_lea.sflag [#allocation6], 1
    %18 = vsyncpa %s17, 0
    loop: start=0, step=1, limit=4
    $region2: #{tpu_custom_call.1} parent=1 // loop_pre_header
      _
    $region3: #{tpu_custom_call.1} parent=1 // loop_header
      %s20 = sphi 0, %s24
      %p21 = scmp.ge.s32.totalorder %s20, 4
      %s27 = sphi 0, %s39
      %s28 = sphi 0, %s35
      %s29 = sphi 0, %s27
      %s30 = sphi 0, %s28
      %s31 = sphi 0, %s29
      %s32 = sphi 0, %s30
      %s44 = sphi 0, %s46
      %s47 = sphi 0, %s44
      %s48 = sphi 0, %s47
      %s64 = sphi 0, %s48
      %s72 = sphi 0, %s74
      %s75 = sphi 0, %s72
      %s76 = sphi 0, %s75
      %s92 = sphi 0, %s76
      %s100 = sphi 0, %s102
      %s103 = sphi 0, %s100
      %s104 = sphi 0, %s103
      %s120 = sphi 0, %s104
      %s124 = sphi 0, %s124
      %s126 = sphi 0, %s124
      %s127 = sphi 0, %s126
      %s141 = sphi 0, %s127
      %s145 = sphi 0, %s145
      %s147 = sphi 0, %s145
      %s148 = sphi 0, %s147
      %s162 = sphi 0, %s148
      %s166 = sphi 0, %s166
      %s168 = sphi 0, %s166
      %s169 = sphi 0, %s168
      %s183 = sphi 0, %s169
      %s187 = sphi 0, %s187
      %s189 = sphi 0, %s187
      %s190 = sphi 0, %s189
      %s204 = sphi 0, %s190
      %s208 = sphi 0, %s208
      %s210 = sphi 0, %s208
      %s211 = sphi 0, %s210
      %s225 = sphi 0, %s211
      %s229 = sphi 0, %s229
      %s231 = sphi 0, %s229
      %s232 = sphi 0, %s231
      %s246 = sphi 0, %s232
      %s252 = sphi 0, %s254
      %s255 = sphi 0, %s252
      %s256 = sphi 0, %s255
      %s272 = sphi 0, %s256
    $region4: #{tpu_custom_call.1} parent=1 // loop_header_branch
      %23 = sbr.rel (%p21) target = $region8
    $region5: #{tpu_custom_call.1} parent=1 // loop_body
      %s25 = ssub.s32 %s20, 1
      %s26 = ssub.s32 %s20, 2
      %s33 = sadd.s32 1, %s28
      %p34 = scmp.ge.s32.totalorder %s33, 1
      %s35 = scalar_select %p34, 0, %s33
      %s36 = sadd.s32 1, %s27
      %s37 = scalar_select %p34, %s36, %s27
      %p38 = scmp.ge.s32.totalorder %s37, 2
      %s39 = scalar_select %p38, 0, %s37
      %s40 = sadd.s32 %s27, %s28
      %s41 = sadd.s32 %s39, %s35
      %s42 = ssub.s32 %s40, %s41
      %p43 = scmp.eq.s32.totalorder %s42, 0
      %s45 = sadd.s32 %s44, 1
      %s46 = scalar_select %p43, %s44, %s45
      %p49 = pneg %p43
      %p50 = scmp.eq.s32.totalorder %s20, 1
      %p51 = por %p49, %p50
      %p52 = scmp.ne.s32.totalorder %s44, %s47
      %p53 = scmp.eq.s32.totalorder %s20, 0
      %p54 = por %p52, %p53
      %p55 = scmp.ne.s32.totalorder %s44, %s47
      %p56 = scmp.eq.s32.totalorder %s25, 1
      %p57 = por %p55, %p56
      %p58 = scmp.ne.s32.totalorder %s47, %s48
      %p59 = scmp.eq.s32.totalorder %s25, 0
      %p60 = por %p58, %p59
      %p61 = scmp.ne.s32.totalorder %s47, %s48
      %p62 = scmp.eq.s32.totalorder %s26, 1
      %p63 = por %p61, %p62
      %p65 = scmp.ne.s32.totalorder %s48, %s64
      %p66 = scmp.eq.s32.totalorder %s26, 0
      %p67 = por %p65, %p66
      %s68 = sadd.s32 %s27, %s28
      %s69 = sadd.s32 %s39, %s35
      %s70 = ssub.s32 %s68, %s69
      %p71 = scmp.eq.s32.totalorder %s70, 0
      %s73 = sadd.s32 %s72, 1
      %s74 = scalar_select %p71, %s72, %s73
      %p77 = pneg %p71
      %p78 = scmp.eq.s32.totalorder %s20, 1
      %p79 = por %p77, %p78
      %p80 = scmp.ne.s32.totalorder %s72, %s75
      %p81 = scmp.eq.s32.totalorder %s20, 0
      %p82 = por %p80, %p81
      %p83 = scmp.ne.s32.totalorder %s72, %s75
      %p84 = scmp.eq.s32.totalorder %s25, 1
      %p85 = por %p83, %p84
      %p86 = scmp.ne.s32.totalorder %s75, %s76
      %p87 = scmp.eq.s32.totalorder %s25, 0
      %p88 = por %p86, %p87
      %p89 = scmp.ne.s32.totalorder %s75, %s76
      %p90 = scmp.eq.s32.totalorder %s26, 1
      %p91 = por %p89, %p90
      %p93 = scmp.ne.s32.totalorder %s76, %s92
      %p94 = scmp.eq.s32.totalorder %s26, 0
      %p95 = por %p93, %p94
      %s96 = sadd.s32 %s27, %s28
      %s97 = sadd.s32 %s39, %s35
      %s98 = ssub.s32 %s96, %s97
      %p99 = scmp.eq.s32.totalorder %s98, 0
      %s101 = sadd.s32 %s100, 1
      %s102 = scalar_select %p99, %s100, %s101
      %p105 = pneg %p99
      %p106 = scmp.eq.s32.totalorder %s20, 1
      %p107 = por %p105, %p106
      %p108 = scmp.ne.s32.totalorder %s100, %s103
      %p109 = scmp.eq.s32.totalorder %s20, 0
      %p110 = por %p108, %p109
      %p111 = scmp.ne.s32.totalorder %s100, %s103
      %p112 = scmp.eq.s32.totalorder %s25, 1
      %p113 = por %p111, %p112
      %p114 = scmp.ne.s32.totalorder %s103, %s104
      %p115 = scmp.eq.s32.totalorder %s25, 0
      %p116 = por %p114, %p115
      %p117 = scmp.ne.s32.totalorder %s103, %s104
      %p118 = scmp.eq.s32.totalorder %s26, 1
      %p119 = por %p117, %p118
      %p121 = scmp.ne.s32.totalorder %s104, %s120
      %p122 = scmp.eq.s32.totalorder %s26, 0
      %p123 = por %p121, %p122
      %s125 = sadd.s32 %s124, 1
      %p128 = scmp.eq.s32.totalorder %s20, 1
      %p129 = scmp.ne.s32.totalorder %s124, %s126
      %p130 = scmp.eq.s32.totalorder %s20, 0
      %p131 = por %p129, %p130
      %p132 = scmp.ne.s32.totalorder %s124, %s126
      %p133 = scmp.eq.s32.totalorder %s25, 1
      %p134 = por %p132, %p133
      %p135 = scmp.ne.s32.totalorder %s126, %s127
      %p136 = scmp.eq.s32.totalorder %s25, 0
      %p137 = por %p135, %p136
      %p138 = scmp.ne.s32.totalorder %s126, %s127
      %p139 = scmp.eq.s32.totalorder %s26, 1
      %p140 = por %p138, %p139
      %p142 = scmp.ne.s32.totalorder %s127, %s141
      %p143 = scmp.eq.s32.totalorder %s26, 0
      %p144 = por %p142, %p143
      %s146 = sadd.s32 %s145, 1
      %p149 = scmp.eq.s32.totalorder %s20, 1
      %p150 = scmp.ne.s32.totalorder %s145, %s147
      %p151 = scmp.eq.s32.totalorder %s20, 0
      %p152 = por %p150, %p151
      %p153 = scmp.ne.s32.totalorder %s145, %s147
      %p154 = scmp.eq.s32.totalorder %s25, 1
      %p155 = por %p153, %p154
      %p156 = scmp.ne.s32.totalorder %s147, %s148
      %p157 = scmp.eq.s32.totalorder %s25, 0
      %p158 = por %p156, %p157
      %p159 = scmp.ne.s32.totalorder %s147, %s148
      %p160 = scmp.eq.s32.totalorder %s26, 1
      %p161 = por %p159, %p160
      %p163 = scmp.ne.s32.totalorder %s148, %s162
      %p164 = scmp.eq.s32.totalorder %s26, 0
      %p165 = por %p163, %p164
      %s167 = sadd.s32 %s166, 1
      %p170 = scmp.eq.s32.totalorder %s20, 1
      %p171 = scmp.ne.s32.totalorder %s166, %s168
      %p172 = scmp.eq.s32.totalorder %s20, 0
      %p173 = por %p171, %p172
      %p174 = scmp.ne.s32.totalorder %s166, %s168
      %p175 = scmp.eq.s32.totalorder %s25, 1
      %p176 = por %p174, %p175
      %p177 = scmp.ne.s32.totalorder %s168, %s169
      %p178 = scmp.eq.s32.totalorder %s25, 0
      %p179 = por %p177, %p178
      %p180 = scmp.ne.s32.totalorder %s168, %s169
      %p181 = scmp.eq.s32.totalorder %s26, 1
      %p182 = por %p180, %p181
      %p184 = scmp.ne.s32.totalorder %s169, %s183
      %p185 = scmp.eq.s32.totalorder %s26, 0
      %p186 = por %p184, %p185
      %s188 = sadd.s32 %s187, 1
      %p191 = scmp.eq.s32.totalorder %s20, 1
      %p192 = scmp.ne.s32.totalorder %s187, %s189
      %p193 = scmp.eq.s32.totalorder %s20, 0
      %p194 = por %p192, %p193
      %p195 = scmp.ne.s32.totalorder %s187, %s189
      %p196 = scmp.eq.s32.totalorder %s25, 1
      %p197 = por %p195, %p196
      %p198 = scmp.ne.s32.totalorder %s189, %s190
      %p199 = scmp.eq.s32.totalorder %s25, 0
      %p200 = por %p198, %p199
      %p201 = scmp.ne.s32.totalorder %s189, %s190
      %p202 = scmp.eq.s32.totalorder %s26, 1
      %p203 = por %p201, %p202
      %p205 = scmp.ne.s32.totalorder %s190, %s204
      %p206 = scmp.eq.s32.totalorder %s26, 0
      %p207 = por %p205, %p206
      %s209 = sadd.s32 %s208, 1
      %p212 = scmp.eq.s32.totalorder %s20, 1
      %p213 = scmp.ne.s32.totalorder %s208, %s210
      %p214 = scmp.eq.s32.totalorder %s20, 0
      %p215 = por %p213, %p214
      %p216 = scmp.ne.s32.totalorder %s208, %s210
      %p217 = scmp.eq.s32.totalorder %s25, 1
      %p218 = por %p216, %p217
      %p219 = scmp.ne.s32.totalorder %s210, %s211
      %p220 = scmp.eq.s32.totalorder %s25, 0
      %p221 = por %p219, %p220
      %p222 = scmp.ne.s32.totalorder %s210, %s211
      %p223 = scmp.eq.s32.totalorder %s26, 1
      %p224 = por %p222, %p223
      %p226 = scmp.ne.s32.totalorder %s211, %s225
      %p227 = scmp.eq.s32.totalorder %s26, 0
      %p228 = por %p226, %p227
      %s230 = sadd.s32 %s229, 1
      %p233 = scmp.eq.s32.totalorder %s20, 1
      %p234 = scmp.ne.s32.totalorder %s229, %s231
      %p235 = scmp.eq.s32.totalorder %s20, 0
      %p236 = por %p234, %p235
      %p237 = scmp.ne.s32.totalorder %s229, %s231
      %p238 = scmp.eq.s32.totalorder %s25, 1
      %p239 = por %p237, %p238
      %p240 = scmp.ne.s32.totalorder %s231, %s232
      %p241 = scmp.eq.s32.totalorder %s25, 0
      %p242 = por %p240, %p241
      %p243 = scmp.ne.s32.totalorder %s231, %s232
      %p244 = scmp.eq.s32.totalorder %s26, 1
      %p245 = por %p243, %p244
      %p247 = scmp.ne.s32.totalorder %s232, %s246
      %p248 = scmp.eq.s32.totalorder %s26, 0
      %p249 = por %p247, %p248
      %s250 = ssub.s32 %s27, %s39
      %p251 = scmp.eq.s32.totalorder %s250, 0
      %s253 = sadd.s32 %s252, 1
      %s254 = scalar_select %p251, %s252, %s253
      %p257 = pneg %p251
      %p258 = scmp.eq.s32.totalorder %s20, 1
      %p259 = por %p257, %p258
      %p260 = scmp.ne.s32.totalorder %s252, %s255
      %p261 = scmp.eq.s32.totalorder %s20, 0
      %p262 = por %p260, %p261
      %p263 = scmp.ne.s32.totalorder %s252, %s255
      %p264 = scmp.eq.s32.totalorder %s25, 1
      %p265 = por %p263, %p264
      %p266 = scmp.ne.s32.totalorder %s255, %s256
      %p267 = scmp.eq.s32.totalorder %s25, 0
      %p268 = por %p266, %p267
      %p269 = scmp.ne.s32.totalorder %s255, %s256
      %p270 = scmp.eq.s32.totalorder %s26, 1
      %p271 = por %p269, %p270
      %p273 = scmp.ne.s32.totalorder %s256, %s272
      %p274 = scmp.eq.s32.totalorder %s26, 0
      %p275 = por %p273, %p274
      %p276 = scmp.le.s32.totalorder 1, %s20
      %p277 = scmp.lt.s32.totalorder %s20, 3
      %p278 = pnand %p276, %p277
      %p279 = pneg %p278
      // Predicated region
      $region9: #{tpu_custom_call.1} parent=5 // pred_check
        _
      $region10: #{tpu_custom_call.1} parent=5 // pred_check_branch
        %281 = sbr.rel (%p278) target = $region12
      $region11: #{tpu_custom_call.1} parent=5 // pred_region
        %s282 = ssub.s32 %s20, 1
        // Predicated region
        $region13: #{tpu_custom_call.1} parent=11 // pred_check
          %p283 = pneg %p137
        $region14: #{tpu_custom_call.1} parent=11 // pred_check_branch
          %285 = sbr.rel (%p283) target = $region16
        $region15: #{tpu_custom_call.1} parent=11 // pred_region
          _
        $region16: #{tpu_custom_call.1} parent=11 // pred_fallthru
          _
        // Predicated region
        $region17: #{tpu_custom_call.1} parent=11 // pred_check
          %p286 = pneg %p158
        $region18: #{tpu_custom_call.1} parent=11 // pred_check_branch
          %288 = sbr.rel (%p286) target = $region20
        $region19: #{tpu_custom_call.1} parent=11 // pred_region
          _
        $region20: #{tpu_custom_call.1} parent=11 // pred_fallthru
          _
        // Predicated region
        $region21: #{tpu_custom_call.1} parent=11 // pred_check
          %p289 = pneg %p179
        $region22: #{tpu_custom_call.1} parent=11 // pred_check_branch
          %291 = sbr.rel (%p289) target = $region24
        $region23: #{tpu_custom_call.1} parent=11 // pred_region
          _
        $region24: #{tpu_custom_call.1} parent=11 // pred_fallthru
          _
        // Predicated region
        $region25: #{tpu_custom_call.1} parent=11 // pred_check
          %p292 = pneg %p200
        $region26: #{tpu_custom_call.1} parent=11 // pred_check_branch
          %294 = sbr.rel (%p292) target = $region28
        $region27: #{tpu_custom_call.1} parent=11 // pred_region
          _
        $region28: #{tpu_custom_call.1} parent=11 // pred_fallthru
          _
        // Predicated region
        $region29: #{tpu_custom_call.1} parent=11 // pred_check
          %p295 = pneg %p221
        $region30: #{tpu_custom_call.1} parent=11 // pred_check_branch
          %297 = sbr.rel (%p295) target = $region32
        $region31: #{tpu_custom_call.1} parent=11 // pred_region
          _
        $region32: #{tpu_custom_call.1} parent=11 // pred_fallthru
          _
        // Predicated region
        $region33: #{tpu_custom_call.1} parent=11 // pred_check
          %p298 = pneg %p242
        $region34: #{tpu_custom_call.1} parent=11 // pred_check_branch
          %300 = sbr.rel (%p298) target = $region36
        $region35: #{tpu_custom_call.1} parent=11 // pred_region
          _
        $region36: #{tpu_custom_call.1} parent=11 // pred_fallthru
          _
      $region12: #{tpu_custom_call.1} parent=5 // pred_fallthru
        _
      %p301 = scmp.lt.s32.totalorder %s20, 2
      // Predicated region
      $region37: #{tpu_custom_call.1} parent=5 // pred_check
        %p302 = pneg %p301
      $region38: #{tpu_custom_call.1} parent=5 // pred_check_branch
        %304 = sbr.rel (%p302) target = $region40
      $region39: #{tpu_custom_call.1} parent=5 // pred_region
        // Predicated region
        $region41: #{tpu_custom_call.1} parent=39 // pred_check
          %p305 = pneg %p54
        $region42: #{tpu_custom_call.1} parent=39 // pred_check_branch
          %307 = sbr.rel (%p305) target = $region44
        $region43: #{tpu_custom_call.1} parent=39 // pred_region
          %s308 = sadd.s32 %s27, %s28
          %p309 = scmp.lt.s32.totalorder %s308, 1
          %s310 = scalar_select %p309, %s308, 1
          %s311 = scalar_lea.vmem %s0, %s310
          %s312 = sadd.s32 %s27, %s28
        $region44: #{tpu_custom_call.1} parent=39 // pred_fallthru
          _
        // Predicated region
        $region45: #{tpu_custom_call.1} parent=39 // pred_check
          %p313 = pneg %p82
        $region46: #{tpu_custom_call.1} parent=39 // pred_check_branch
          %315 = sbr.rel (%p313) target = $region48
        $region47: #{tpu_custom_call.1} parent=39 // pred_region
          %s316 = sadd.s32 %s27, %s28
          %s317 = smul.u32 16, %s316
          %p318 = scmp.lt.s32.totalorder %s317, 31
          %s319 = scalar_select %p318, %s317, 31
          %s320 = smul.addr %s319, 8
          %s321 = scalar_lea.vmem %s1, %s320
          %s322 = sadd.s32 %s27, %s28
          %s323 = smul.u32 16, %s322
        $region48: #{tpu_custom_call.1} parent=39 // pred_fallthru
          _
        // Predicated region
        $region49: #{tpu_custom_call.1} parent=39 // pred_check
          %p324 = pneg %p110
        $region50: #{tpu_custom_call.1} parent=39 // pred_check_branch
          %326 = sbr.rel (%p324) target = $region52
        $region51: #{tpu_custom_call.1} parent=39 // pred_region
          %s327 = sadd.s32 %s27, %s28
          %s328 = smul.u32 16, %s327
          %p329 = scmp.lt.s32.totalorder %s328, 31
          %s330 = scalar_select %p329, %s328, 31
          %s331 = smul.addr %s330, 8
          %s332 = scalar_lea.vmem %s2, %s331
          %s333 = sadd.s32 %s27, %s28
          %s334 = smul.u32 16, %s333
        $region52: #{tpu_custom_call.1} parent=39 // pred_fallthru
          _
      $region40: #{tpu_custom_call.1} parent=5 // pred_fallthru
        _
      %p335 = scmp.le.s32.totalorder 1, %s20
      %p336 = scmp.lt.s32.totalorder %s20, 3
      %p337 = pnand %p335, %p336
      %p338 = pneg %p337
      // Predicated region
      $region53: #{tpu_custom_call.1} parent=5 // pred_check
        _
      $region54: #{tpu_custom_call.1} parent=5 // pred_check_branch
        %340 = sbr.rel (%p337) target = $region56
      $region55: #{tpu_custom_call.1} parent=5 // pred_region
        %s341 = ssub.s32 %s20, 1
        %s342 = sadd.s32 %s29, %s30
        %p343 = scmp.lt.s32.totalorder %s342, 1
        %s344 = scalar_select %p343, %s342, 1
        %s345 = scalar_lea.vmem %s0, %s344
        %p346 = pneg %p60
        %p347 = pneg %p57
        %s348 = sadd.s32 %s29, %s30
        %s349 = smul.u32 16, %s348
        %p350 = scmp.lt.s32.totalorder %s349, 31
        %s351 = scalar_select %p350, %s349, 31
        %s352 = smul.addr %s351, 8
        %s353 = scalar_lea.vmem %s1, %s352
        %p354 = pneg %p88
        %p355 = pneg %p85
        %s356 = sadd.s32 %s29, %s30
        %s357 = smul.u32 16, %s356
        %p358 = scmp.lt.s32.totalorder %s357, 31
        %s359 = scalar_select %p358, %s357, 31
        %s360 = smul.addr %s359, 8
        %s361 = scalar_lea.vmem %s2, %s360
        %p362 = pneg %p116
        %p363 = pneg %p113
        %p364 = pneg %p137
        %p365 = pneg %p134
        %p366 = pneg %p158
        %p367 = pneg %p155
        %p368 = pneg %p179
        %p369 = pneg %p176
        %p370 = pneg %p200
        %p371 = pneg %p197
        %p372 = pneg %p221
        %p373 = pneg %p218
        %p374 = pneg %p242
        %p375 = pneg %p239
        %p376 = pneg %p268
        %p377 = pneg %p265
        %s378 = sand.u32 %s255, 1
        %s379 = scalar_lea.sflag [#allocation6], %s378
        %s380 = sand.u32 %s255, 1
        %s381 = smul.addr %s380, 12
        %s382 = scalar_lea.vmem [#allocation5], %s381
        %s383 = sadd.s32 %s29, %s30
        %p384 = scmp.lt.s32.totalorder %s383, 1
        %s385 = scalar_select %p384, %s383, 1
        %s386 = scalar_lea.vmem %s0, %s385
        %s387 = sadd.s32 %s29, %s30
        %s388 = sadd.s32 %s29, %s30
        %s389 = smul.u32 16, %s388
        %p390 = scmp.lt.s32.totalorder %s389, 31
        %s391 = scalar_select %p390, %s389, 31
        %s392 = smul.addr %s391, 8
        %s393 = scalar_lea.vmem %s1, %s392
        %s394 = sadd.s32 %s29, %s30
        %s395 = smul.u32 16, %s394
        %s396 = sadd.s32 %s29, %s30
        %s397 = smul.u32 16, %s396
        %p398 = scmp.lt.s32.totalorder %s397, 31
        %s399 = scalar_select %p398, %s397, 31
        %s400 = smul.addr %s399, 8
        %s401 = scalar_lea.vmem %s2, %s400
        %s402 = sadd.s32 %s29, %s30
        %s403 = smul.u32 16, %s402
        %p404 = scmp.eq.s32.totalorder %s30, 0
        // Predicated region
        $region57: #{tpu_custom_call.1} parent=55 // pred_check
          %p405 = pneg %p404
        $region58: #{tpu_custom_call.1} parent=55 // pred_check_branch
          %407 = sbr.rel (%p405) target = $region60
        $region59: #{tpu_custom_call.1} parent=55 // pred_region
          %408 = vst [vmem:[%s382] sm:$0xff] 0.0
          %409 = vst [vmem:[%s382 + $0x8] sm:$0xf] 0.0
          %v410 = vlaneseq
          %v411 = vshrl.u32 %v410, 7
          %412 = vst [vmem:[#allocation3] sm:$0xf] %v411
        $region60: #{tpu_custom_call.1} parent=55 // pred_fallthru
          _
        %v413 = vld [vmem:[%s393] sm:$0xff]
        %v414 = vld [vmem:[%s393 + $0x8] sm:$0xff]
        %v415 = vld [vmem:[%s393 + $0x10] sm:$0xff]
        %v416 = vld [vmem:[%s393 + $0x18] sm:$0xff]
        %v417 = vld [vmem:[%s393 + $0x20] sm:$0xff]
        %v418 = vld [vmem:[%s393 + $0x28] sm:$0xff]
        %v419 = vld [vmem:[%s393 + $0x30] sm:$0xff]
        %v420 = vld [vmem:[%s393 + $0x38] sm:$0xff]
        %v421 = vld [vmem:[%s393 + $0x40] sm:$0xff]
        %v422 = vld [vmem:[%s393 + $0x48] sm:$0xff]
        %v423 = vld [vmem:[%s393 + $0x50] sm:$0xff]
        %v424 = vld [vmem:[%s393 + $0x58] sm:$0xff]
        %v425 = vld [vmem:[%s393 + $0x60] sm:$0xff]
        %v426 = vld [vmem:[%s393 + $0x68] sm:$0xff]
        %v427 = vld [vmem:[%s393 + $0x70] sm:$0xff]
        %v428 = vld [vmem:[%s393 + $0x78] sm:$0xff]
        %v429 = vld [vmem:[%s3] sm:$0xff]
        %v430 = vld [vmem:[%s3 + $0x8] sm:$0xff]
        %v431 = vld [vmem:[%s3 + $0x10] sm:$0xff]
        %v432 = vld [vmem:[%s3 + $0x18] sm:$0xff]
        %v433 = vld [vmem:[%s4] sm:$0x1]
        %v435 = vperm.slane %v433, 0
        %vm437 = vcmask 261120
        %v439 = vsel %vm437, %v413, 0
        %v442 = vsel %vm437, %v414, 0
        %v445 = vsel %vm437, %v415, 0
        %v448 = vsel %vm437, %v416, 0
        %v451 = vsel %vm437, %v417, 0
        %v454 = vsel %vm437, %v418, 0
        %v457 = vsel %vm437, %v419, 0
        %v460 = vsel %vm437, %v420, 0
        %v463 = vsel %vm437, %v421, 0
        %v466 = vsel %vm437, %v422, 0
        %v469 = vsel %vm437, %v423, 0
        %v472 = vsel %vm437, %v424, 0
        %v475 = vsel %vm437, %v425, 0
        %v478 = vsel %vm437, %v426, 0
        %v481 = vsel %vm437, %v427, 0
        %v484 = vsel %vm437, %v428, 0
        %486 = vmatpush.msra.mxu0 0.0
        %487 = vmatpush.msra.mxu0 0.0
        %488 = vmatpush.msra.mxu0 0.0
        %489 = vmatpush.msra.mxu0 0.0
        %490 = vmatpush.msra.mxu0 0.0
        %491 = vmatpush.msra.mxu0 0.0
        %492 = vmatpush.msra.mxu0 0.0
        %493 = vmatpush.msra.mxu0 0.0
        %494 = vmatpush.msra.mxu0 0.0
        %495 = vmatpush.msra.mxu0 0.0
        %496 = vmatpush.msra.mxu0 0.0
        %497 = vmatpush.msra.mxu0 0.0
        %498 = vmatpush.msra.mxu0 %v432
        %499 = vmatpush.msra.mxu0 %v431
        %500 = vmatpush.msra.mxu0 %v430
        %501 = vmatpush.msra.mxu0 %v429
        %502 = vmatmul.f32.gmra.mxu0 %v439
        %v503 = vpop.f32.mrf.mxu0
        %v504 = vadd.f32 %v435, %v503
        %505 = vmatmul.f32.gmra.mxu0 %v442
        %v506 = vpop.f32.mrf.mxu0
        %v507 = vadd.f32 %v435, %v506
        %508 = vmatmul.f32.gmra.mxu0 %v445
        %v509 = vpop.f32.mrf.mxu0
        %v510 = vadd.f32 %v435, %v509
        %511 = vmatmul.f32.gmra.mxu0 %v448
        %v512 = vpop.f32.mrf.mxu0
        %v513 = vadd.f32 %v435, %v512
        %514 = vmatmul.f32.gmra.mxu0 %v451
        %v515 = vpop.f32.mrf.mxu0
        %v516 = vadd.f32 %v435, %v515
        %517 = vmatmul.f32.gmra.mxu0 %v454
        %v518 = vpop.f32.mrf.mxu0
        %v519 = vadd.f32 %v435, %v518
        %520 = vmatmul.f32.gmra.mxu0 %v457
        %v521 = vpop.f32.mrf.mxu0
        %v522 = vadd.f32 %v435, %v521
        %523 = vmatmul.f32.gmra.mxu0 %v460
        %v524 = vpop.f32.mrf.mxu0
        %v525 = vadd.f32 %v435, %v524
        %526 = vmatmul.f32.gmra.mxu0 %v463
        %v527 = vpop.f32.mrf.mxu0
        %v528 = vadd.f32 %v435, %v527
        %529 = vmatmul.f32.gmra.mxu0 %v466
        %v530 = vpop.f32.mrf.mxu0
        %v531 = vadd.f32 %v435, %v530
        %532 = vmatmul.f32.gmra.mxu0 %v469
        %v533 = vpop.f32.mrf.mxu0
        %v534 = vadd.f32 %v435, %v533
        %535 = vmatmul.f32.gmra.mxu0 %v472
        %v536 = vpop.f32.mrf.mxu0
        %v537 = vadd.f32 %v435, %v536
        %538 = vmatmul.f32.gmra.mxu0 %v475
        %v539 = vpop.f32.mrf.mxu0
        %v540 = vadd.f32 %v435, %v539
        %541 = vmatmul.f32.gmra.mxu0 %v478
        %v542 = vpop.f32.mrf.mxu0
        %v543 = vadd.f32 %v435, %v542
        %544 = vmatmul.f32.gmra.mxu0 %v481
        %v545 = vpop.f32.mrf.mxu0
        %v546 = vadd.f32 %v435, %v545
        %547 = vmatmul.f32.gmra.mxu0 %v484
        %v548 = vpop.f32.mrf.mxu0
        %v549 = vadd.f32 %v435, %v548
        %550 = vdwg.mxu0
        %v551 = vmax.f32 %v504, 0.0
        %v552 = vmax.f32 %v507, 0.0
        %v553 = vmax.f32 %v510, 0.0
        %v554 = vmax.f32 %v513, 0.0
        %v555 = vmax.f32 %v516, 0.0
        %v556 = vmax.f32 %v519, 0.0
        %v557 = vmax.f32 %v522, 0.0
        %v558 = vmax.f32 %v525, 0.0
        %v559 = vmax.f32 %v528, 0.0
        %v560 = vmax.f32 %v531, 0.0
        %v561 = vmax.f32 %v534, 0.0
        %v562 = vmax.f32 %v537, 0.0
        %v563 = vmax.f32 %v540, 0.0
        %v564 = vmax.f32 %v543, 0.0
        %v565 = vmax.f32 %v546, 0.0
        %v566 = vmax.f32 %v549, 0.0
        %v567 = vld [vmem:[%s5] sm:$0x1]
        %v569 = vperm.slane %v567, 0
        %v571 = vmul.f32 %v551, %v569
        %v572 = vmul.f32 %v552, %v569
        %v573 = vmul.f32 %v553, %v569
        %v574 = vmul.f32 %v554, %v569
        %v575 = vmul.f32 %v555, %v569
        %v576 = vmul.f32 %v556, %v569
        %v577 = vmul.f32 %v557, %v569
        %v578 = vmul.f32 %v558, %v569
        %v579 = vmul.f32 %v559, %v569
        %v580 = vmul.f32 %v560, %v569
        %v581 = vmul.f32 %v561, %v569
        %v582 = vmul.f32 %v562, %v569
        %v583 = vmul.f32 %v563, %v569
        %v584 = vmul.f32 %v564, %v569
        %v585 = vmul.f32 %v565, %v569
        %v586 = vmul.f32 %v566, %v569
        %587 = vadd.xlane.f32.xlu0 %v571
        %v588 = vpop.xlane.xlu0 %587
        %589 = vadd.xlane.f32.xlu0 %v572
        %v590 = vpop.xlane.xlu0 %589
        %591 = vadd.xlane.f32.xlu0 %v573
        %v592 = vpop.xlane.xlu0 %591
        %593 = vadd.xlane.f32.xlu0 %v574
        %v594 = vpop.xlane.xlu0 %593
        %595 = vadd.xlane.f32.xlu0 %v575
        %v596 = vpop.xlane.xlu0 %595
        %597 = vadd.xlane.f32.xlu0 %v576
        %v598 = vpop.xlane.xlu0 %597
        %599 = vadd.xlane.f32.xlu0 %v577
        %v600 = vpop.xlane.xlu0 %599
        %601 = vadd.xlane.f32.xlu0 %v578
        %v602 = vpop.xlane.xlu0 %601
        %603 = vadd.xlane.f32.xlu0 %v579
        %v604 = vpop.xlane.xlu0 %603
        %605 = vadd.xlane.f32.xlu0 %v580
        %v606 = vpop.xlane.xlu0 %605
        %607 = vadd.xlane.f32.xlu0 %v581
        %v608 = vpop.xlane.xlu0 %607
        %609 = vadd.xlane.f32.xlu0 %v582
        %v610 = vpop.xlane.xlu0 %609
        %611 = vadd.xlane.f32.xlu0 %v583
        %v612 = vpop.xlane.xlu0 %611
        %613 = vadd.xlane.f32.xlu0 %v584
        %v614 = vpop.xlane.xlu0 %613
        %615 = vadd.xlane.f32.xlu0 %v585
        %v616 = vpop.xlane.xlu0 %615
        %617 = vadd.xlane.f32.xlu0 %v586
        %v618 = vpop.xlane.xlu0 %617
        %v619 = vld [vmem:[#allocation4] sm:$0x1]
        %v621 = vperm.slane %v619, 0
        %v623 = vadd.f32 %v588, %v621
        %v624 = vadd.f32 %v590, %v621
        %v625 = vadd.f32 %v592, %v621
        %v626 = vadd.f32 %v594, %v621
        %v627 = vadd.f32 %v596, %v621
        %v628 = vadd.f32 %v598, %v621
        %v629 = vadd.f32 %v600, %v621
        %v630 = vadd.f32 %v602, %v621
        %v631 = vadd.f32 %v604, %v621
        %v632 = vadd.f32 %v606, %v621
        %v633 = vadd.f32 %v608, %v621
        %v634 = vadd.f32 %v610, %v621
        %v635 = vadd.f32 %v612, %v621
        %v636 = vadd.f32 %v614, %v621
        %v637 = vadd.f32 %v616, %v621
        %v638 = vadd.f32 %v618, %v621
        %v639 = vxor.u32 %v623, 2147483648
        %v640 = vxor.u32 %v624, 2147483648
        %v641 = vxor.u32 %v625, 2147483648
        %v642 = vxor.u32 %v626, 2147483648
        %v643 = vxor.u32 %v627, 2147483648
        %v644 = vxor.u32 %v628, 2147483648
        %v645 = vxor.u32 %v629, 2147483648
        %v646 = vxor.u32 %v630, 2147483648
        %v647 = vxor.u32 %v631, 2147483648
        %v648 = vxor.u32 %v632, 2147483648
        %v649 = vxor.u32 %v633, 2147483648
        %v650 = vxor.u32 %v634, 2147483648
        %v651 = vxor.u32 %v635, 2147483648
        %v652 = vxor.u32 %v636, 2147483648
        %v653 = vxor.u32 %v637, 2147483648
        %v654 = vxor.u32 %v638, 2147483648
        %v655 = vmul.f32 %v639, 1.442695
        %v656 = vpow.pop %v655
        %v657 = vmul.f32 %v640, 1.442695
        %v658 = vpow.pop %v657
        %v659 = vmul.f32 %v641, 1.442695
        %v660 = vpow.pop %v659
        %v661 = vmul.f32 %v642, 1.442695
        %v662 = vpow.pop %v661
        %v663 = vmul.f32 %v643, 1.442695
        %v664 = vpow.pop %v663
        %v665 = vmul.f32 %v644, 1.442695
        %v666 = vpow.pop %v665
        %v667 = vmul.f32 %v645, 1.442695
        %v668 = vpow.pop %v667
        %v669 = vmul.f32 %v646, 1.442695
        %v670 = vpow.pop %v669
        %v671 = vmul.f32 %v647, 1.442695
        %v672 = vpow.pop %v671
        %v673 = vmul.f32 %v648, 1.442695
        %v674 = vpow.pop %v673
        %v675 = vmul.f32 %v649, 1.442695
        %v676 = vpow.pop %v675
        %v677 = vmul.f32 %v650, 1.442695
        %v678 = vpow.pop %v677
        %v679 = vmul.f32 %v651, 1.442695
        %v680 = vpow.pop %v679
        %v681 = vmul.f32 %v652, 1.442695
        %v682 = vpow.pop %v681
        %v683 = vmul.f32 %v653, 1.442695
        %v684 = vpow.pop %v683
        %v685 = vmul.f32 %v654, 1.442695
        %v686 = vpow.pop %v685
        %v687 = vadd.f32 %v656, 1.0
        %v688 = vadd.f32 %v658, 1.0
        %v689 = vadd.f32 %v660, 1.0
        %v690 = vadd.f32 %v662, 1.0
        %v691 = vadd.f32 %v664, 1.0
        %v692 = vadd.f32 %v666, 1.0
        %v693 = vadd.f32 %v668, 1.0
        %v694 = vadd.f32 %v670, 1.0
        %v695 = vadd.f32 %v672, 1.0
        %v696 = vadd.f32 %v674, 1.0
        %v697 = vadd.f32 %v676, 1.0
        %v698 = vadd.f32 %v678, 1.0
        %v699 = vadd.f32 %v680, 1.0
        %v700 = vadd.f32 %v682, 1.0
        %v701 = vadd.f32 %v684, 1.0
        %v702 = vadd.f32 %v686, 1.0
        %v703 = vrcp.pop %v687
        %v704 = vmul.f32 %v687, %v703
        %v705 = vsub.f32 1.0, %v704
        %v706 = vmul.f32 %v703, %v705
        %v707 = vadd.f32 %v703, %v706
        %vm708 = vweird.f32 %v687
        %vm709 = vweird.f32 %v703
        %vm710 = vmor %vm708, %vm709
        %v711 = vsel %vm710, %v703, %v707
        %v712 = vand.u32 2147483647, %v687
        %vm713 = vcmp.eq.f32.partialorder %v712, 8.507059e+37
        %v714 = vand.u32 %v687, 2147483648
        %v715 = vor.u32 1.1754944e-38, %v714
        %v716 = vsel %vm713, %v715, %v711
        %v717 = vmul.f32 1.0, %v716
        %v718 = vrcp.pop %v688
        %v719 = vmul.f32 %v688, %v718
        %v720 = vsub.f32 1.0, %v719
        %v721 = vmul.f32 %v718, %v720
        %v722 = vadd.f32 %v718, %v721
        %vm723 = vweird.f32 %v688
        %vm724 = vweird.f32 %v718
        %vm725 = vmor %vm723, %vm724
        %v726 = vsel %vm725, %v718, %v722
        %v727 = vand.u32 2147483647, %v688
        %vm728 = vcmp.eq.f32.partialorder %v727, 8.507059e+37
        %v729 = vand.u32 %v688, 2147483648
        %v730 = vor.u32 1.1754944e-38, %v729
        %v731 = vsel %vm728, %v730, %v726
        %v732 = vmul.f32 1.0, %v731
        %v733 = vrcp.pop %v689
        %v734 = vmul.f32 %v689, %v733
        %v735 = vsub.f32 1.0, %v734
        %v736 = vmul.f32 %v733, %v735
        %v737 = vadd.f32 %v733, %v736
        %vm738 = vweird.f32 %v689
        %vm739 = vweird.f32 %v733
        %vm740 = vmor %vm738, %vm739
        %v741 = vsel %vm740, %v733, %v737
        %v742 = vand.u32 2147483647, %v689
        %vm743 = vcmp.eq.f32.partialorder %v742, 8.507059e+37
        %v744 = vand.u32 %v689, 2147483648
        %v745 = vor.u32 1.1754944e-38, %v744
        %v746 = vsel %vm743, %v745, %v741
        %v747 = vmul.f32 1.0, %v746
        %v748 = vrcp.pop %v690
        %v749 = vmul.f32 %v690, %v748
        %v750 = vsub.f32 1.0, %v749
        %v751 = vmul.f32 %v748, %v750
        %v752 = vadd.f32 %v748, %v751
        %vm753 = vweird.f32 %v690
        %vm754 = vweird.f32 %v748
        %vm755 = vmor %vm753, %vm754
        %v756 = vsel %vm755, %v748, %v752
        %v757 = vand.u32 2147483647, %v690
        %vm758 = vcmp.eq.f32.partialorder %v757, 8.507059e+37
        %v759 = vand.u32 %v690, 2147483648
        %v760 = vor.u32 1.1754944e-38, %v759
        %v761 = vsel %vm758, %v760, %v756
        %v762 = vmul.f32 1.0, %v761
        %v763 = vrcp.pop %v691
        %v764 = vmul.f32 %v691, %v763
        %v765 = vsub.f32 1.0, %v764
        %v766 = vmul.f32 %v763, %v765
        %v767 = vadd.f32 %v763, %v766
        %vm768 = vweird.f32 %v691
        %vm769 = vweird.f32 %v763
        %vm770 = vmor %vm768, %vm769
        %v771 = vsel %vm770, %v763, %v767
        %v772 = vand.u32 2147483647, %v691
        %vm773 = vcmp.eq.f32.partialorder %v772, 8.507059e+37
        %v774 = vand.u32 %v691, 2147483648
        %v775 = vor.u32 1.1754944e-38, %v774
        %v776 = vsel %vm773, %v775, %v771
        %v777 = vmul.f32 1.0, %v776
        %v778 = vrcp.pop %v692
        %v779 = vmul.f32 %v692, %v778
        %v780 = vsub.f32 1.0, %v779
        %v781 = vmul.f32 %v778, %v780
        %v782 = vadd.f32 %v778, %v781
        %vm783 = vweird.f32 %v692
        %vm784 = vweird.f32 %v778
        %vm785 = vmor %vm783, %vm784
        %v786 = vsel %vm785, %v778, %v782
        %v787 = vand.u32 2147483647, %v692
        %vm788 = vcmp.eq.f32.partialorder %v787, 8.507059e+37
        %v789 = vand.u32 %v692, 2147483648
        %v790 = vor.u32 1.1754944e-38, %v789
        %v791 = vsel %vm788, %v790, %v786
        %v792 = vmul.f32 1.0, %v791
        %v793 = vrcp.pop %v693
        %v794 = vmul.f32 %v693, %v793
        %v795 = vsub.f32 1.0, %v794
        %v796 = vmul.f32 %v793, %v795
        %v797 = vadd.f32 %v793, %v796
        %vm798 = vweird.f32 %v693
        %vm799 = vweird.f32 %v793
        %vm800 = vmor %vm798, %vm799
        %v801 = vsel %vm800, %v793, %v797
        %v802 = vand.u32 2147483647, %v693
        %vm803 = vcmp.eq.f32.partialorder %v802, 8.507059e+37
        %v804 = vand.u32 %v693, 2147483648
        %v805 = vor.u32 1.1754944e-38, %v804
        %v806 = vsel %vm803, %v805, %v801
        %v807 = vmul.f32 1.0, %v806
        %v808 = vrcp.pop %v694
        %v809 = vmul.f32 %v694, %v808
        %v810 = vsub.f32 1.0, %v809
        %v811 = vmul.f32 %v808, %v810
        %v812 = vadd.f32 %v808, %v811
        %vm813 = vweird.f32 %v694
        %vm814 = vweird.f32 %v808
        %vm815 = vmor %vm813, %vm814
        %v816 = vsel %vm815, %v808, %v812
        %v817 = vand.u32 2147483647, %v694
        %vm818 = vcmp.eq.f32.partialorder %v817, 8.507059e+37
        %v819 = vand.u32 %v694, 2147483648
        %v820 = vor.u32 1.1754944e-38, %v819
        %v821 = vsel %vm818, %v820, %v816
        %v822 = vmul.f32 1.0, %v821
        %v823 = vrcp.pop %v695
        %v824 = vmul.f32 %v695, %v823
        %v825 = vsub.f32 1.0, %v824
        %v826 = vmul.f32 %v823, %v825
        %v827 = vadd.f32 %v823, %v826
        %vm828 = vweird.f32 %v695
        %vm829 = vweird.f32 %v823
        %vm830 = vmor %vm828, %vm829
        %v831 = vsel %vm830, %v823, %v827
        %v832 = vand.u32 2147483647, %v695
        %vm833 = vcmp.eq.f32.partialorder %v832, 8.507059e+37
        %v834 = vand.u32 %v695, 2147483648
        %v835 = vor.u32 1.1754944e-38, %v834
        %v836 = vsel %vm833, %v835, %v831
        %v837 = vmul.f32 1.0, %v836
        %v838 = vrcp.pop %v696
        %v839 = vmul.f32 %v696, %v838
        %v840 = vsub.f32 1.0, %v839
        %v841 = vmul.f32 %v838, %v840
        %v842 = vadd.f32 %v838, %v841
        %vm843 = vweird.f32 %v696
        %vm844 = vweird.f32 %v838
        %vm845 = vmor %vm843, %vm844
        %v846 = vsel %vm845, %v838, %v842
        %v847 = vand.u32 2147483647, %v696
        %vm848 = vcmp.eq.f32.partialorder %v847, 8.507059e+37
        %v849 = vand.u32 %v696, 2147483648
        %v850 = vor.u32 1.1754944e-38, %v849
        %v851 = vsel %vm848, %v850, %v846
        %v852 = vmul.f32 1.0, %v851
        %v853 = vrcp.pop %v697
        %v854 = vmul.f32 %v697, %v853
        %v855 = vsub.f32 1.0, %v854
        %v856 = vmul.f32 %v853, %v855
        %v857 = vadd.f32 %v853, %v856
        %vm858 = vweird.f32 %v697
        %vm859 = vweird.f32 %v853
        %vm860 = vmor %vm858, %vm859
        %v861 = vsel %vm860, %v853, %v857
        %v862 = vand.u32 2147483647, %v697
        %vm863 = vcmp.eq.f32.partialorder %v862, 8.507059e+37
        %v864 = vand.u32 %v697, 2147483648
        %v865 = vor.u32 1.1754944e-38, %v864
        %v866 = vsel %vm863, %v865, %v861
        %v867 = vmul.f32 1.0, %v866
        %v868 = vrcp.pop %v698
        %v869 = vmul.f32 %v698, %v868
        %v870 = vsub.f32 1.0, %v869
        %v871 = vmul.f32 %v868, %v870
        %v872 = vadd.f32 %v868, %v871
        %vm873 = vweird.f32 %v698
        %vm874 = vweird.f32 %v868
        %vm875 = vmor %vm873, %vm874
        %v876 = vsel %vm875, %v868, %v872
        %v877 = vand.u32 2147483647, %v698
        %vm878 = vcmp.eq.f32.partialorder %v877, 8.507059e+37
        %v879 = vand.u32 %v698, 2147483648
        %v880 = vor.u32 1.1754944e-38, %v879
        %v881 = vsel %vm878, %v880, %v876
        %v882 = vmul.f32 1.0, %v881
        %v883 = vrcp.pop %v699
        %v884 = vmul.f32 %v699, %v883
        %v885 = vsub.f32 1.0, %v884
        %v886 = vmul.f32 %v883, %v885
        %v887 = vadd.f32 %v883, %v886
        %vm888 = vweird.f32 %v699
        %vm889 = vweird.f32 %v883
        %vm890 = vmor %vm888, %vm889
        %v891 = vsel %vm890, %v883, %v887
        %v892 = vand.u32 2147483647, %v699
        %vm893 = vcmp.eq.f32.partialorder %v892, 8.507059e+37
        %v894 = vand.u32 %v699, 2147483648
        %v895 = vor.u32 1.1754944e-38, %v894
        %v896 = vsel %vm893, %v895, %v891
        %v897 = vmul.f32 1.0, %v896
        %v898 = vrcp.pop %v700
        %v899 = vmul.f32 %v700, %v898
        %v900 = vsub.f32 1.0, %v899
        %v901 = vmul.f32 %v898, %v900
        %v902 = vadd.f32 %v898, %v901
        %vm903 = vweird.f32 %v700
        %vm904 = vweird.f32 %v898
        %vm905 = vmor %vm903, %vm904
        %v906 = vsel %vm905, %v898, %v902
        %v907 = vand.u32 2147483647, %v700
        %vm908 = vcmp.eq.f32.partialorder %v907, 8.507059e+37
        %v909 = vand.u32 %v700, 2147483648
        %v910 = vor.u32 1.1754944e-38, %v909
        %v911 = vsel %vm908, %v910, %v906
        %v912 = vmul.f32 1.0, %v911
        %v913 = vrcp.pop %v701
        %v914 = vmul.f32 %v701, %v913
        %v915 = vsub.f32 1.0, %v914
        %v916 = vmul.f32 %v913, %v915
        %v917 = vadd.f32 %v913, %v916
        %vm918 = vweird.f32 %v701
        %vm919 = vweird.f32 %v913
        %vm920 = vmor %vm918, %vm919
        %v921 = vsel %vm920, %v913, %v917
        %v922 = vand.u32 2147483647, %v701
        %vm923 = vcmp.eq.f32.partialorder %v922, 8.507059e+37
        %v924 = vand.u32 %v701, 2147483648
        %v925 = vor.u32 1.1754944e-38, %v924
        %v926 = vsel %vm923, %v925, %v921
        %v927 = vmul.f32 1.0, %v926
        %v928 = vrcp.pop %v702
        %v929 = vmul.f32 %v702, %v928
        %v930 = vsub.f32 1.0, %v929
        %v931 = vmul.f32 %v928, %v930
        %v932 = vadd.f32 %v928, %v931
        %vm933 = vweird.f32 %v702
        %vm934 = vweird.f32 %v928
        %vm935 = vmor %vm933, %vm934
        %v936 = vsel %vm935, %v928, %v932
        %v937 = vand.u32 2147483647, %v702
        %vm938 = vcmp.eq.f32.partialorder %v937, 8.507059e+37
        %v939 = vand.u32 %v702, 2147483648
        %v940 = vor.u32 1.1754944e-38, %v939
        %v941 = vsel %vm938, %v940, %v936
        %v942 = vmul.f32 1.0, %v941
        %v943 = vld [vmem:[%s401] sm:$0xff]
        %v944 = vld [vmem:[%s401 + $0x8] sm:$0xff]
        %v945 = vld [vmem:[%s401 + $0x10] sm:$0xff]
        %v946 = vld [vmem:[%s401 + $0x18] sm:$0xff]
        %v947 = vld [vmem:[%s401 + $0x20] sm:$0xff]
        %v948 = vld [vmem:[%s401 + $0x28] sm:$0xff]
        %v949 = vld [vmem:[%s401 + $0x30] sm:$0xff]
        %v950 = vld [vmem:[%s401 + $0x38] sm:$0xff]
        %v951 = vld [vmem:[%s401 + $0x40] sm:$0xff]
        %v952 = vld [vmem:[%s401 + $0x48] sm:$0xff]
        %v953 = vld [vmem:[%s401 + $0x50] sm:$0xff]
        %v954 = vld [vmem:[%s401 + $0x58] sm:$0xff]
        %v955 = vld [vmem:[%s401 + $0x60] sm:$0xff]
        %v956 = vld [vmem:[%s401 + $0x68] sm:$0xff]
        %v957 = vld [vmem:[%s401 + $0x70] sm:$0xff]
        %v958 = vld [vmem:[%s401 + $0x78] sm:$0xff]
        %v959 = vld [vmem:[%s7] sm:$0xff]
        %v960 = vld [vmem:[%s7 + $0x8] sm:$0xff]
        %v961 = vld [vmem:[%s7 + $0x10] sm:$0xff]
        %v962 = vld [vmem:[%s7 + $0x18] sm:$0xff]
        %v963 = vld [vmem:[%s8] sm:$0x1]
        %v965 = vperm.slane %v963, 0
        %v968 = vsel %vm437, %v943, 0
        %v971 = vsel %vm437, %v944, 0
        %v974 = vsel %vm437, %v945, 0
        %v977 = vsel %vm437, %v946, 0
        %v980 = vsel %vm437, %v947, 0
        %v983 = vsel %vm437, %v948, 0
        %v986 = vsel %vm437, %v949, 0
        %v989 = vsel %vm437, %v950, 0
        %v992 = vsel %vm437, %v951, 0
        %v995 = vsel %vm437, %v952, 0
        %v998 = vsel %vm437, %v953, 0
        %v1001 = vsel %vm437, %v954, 0
        %v1004 = vsel %vm437, %v955, 0
        %v1007 = vsel %vm437, %v956, 0
        %v1010 = vsel %vm437, %v957, 0
        %v1013 = vsel %vm437, %v958, 0
        %1015 = vmatpush.msra.mxu0 0.0
        %1016 = vmatpush.msra.mxu0 0.0
        %1017 = vmatpush.msra.mxu0 0.0
        %1018 = vmatpush.msra.mxu0 0.0
        %1019 = vmatpush.msra.mxu0 0.0
        %1020 = vmatpush.msra.mxu0 0.0
        %1021 = vmatpush.msra.mxu0 0.0
        %1022 = vmatpush.msra.mxu0 0.0
        %1023 = vmatpush.msra.mxu0 0.0
        %1024 = vmatpush.msra.mxu0 0.0
        %1025 = vmatpush.msra.mxu0 0.0
        %1026 = vmatpush.msra.mxu0 0.0
        %1027 = vmatpush.msra.mxu0 %v962
        %1028 = vmatpush.msra.mxu0 %v961
        %1029 = vmatpush.msra.mxu0 %v960
        %1030 = vmatpush.msra.mxu0 %v959
        %1031 = vmatmul.f32.gmra.mxu0 %v968
        %v1032 = vpop.f32.mrf.mxu0
        %v1033 = vadd.f32 %v965, %v1032
        %1034 = vmatmul.f32.gmra.mxu0 %v971
        %v1035 = vpop.f32.mrf.mxu0
        %v1036 = vadd.f32 %v965, %v1035
        %1037 = vmatmul.f32.gmra.mxu0 %v974
        %v1038 = vpop.f32.mrf.mxu0
        %v1039 = vadd.f32 %v965, %v1038
        %1040 = vmatmul.f32.gmra.mxu0 %v977
        %v1041 = vpop.f32.mrf.mxu0
        %v1042 = vadd.f32 %v965, %v1041
        %1043 = vmatmul.f32.gmra.mxu0 %v980
        %v1044 = vpop.f32.mrf.mxu0
        %v1045 = vadd.f32 %v965, %v1044
        %1046 = vmatmul.f32.gmra.mxu0 %v983
        %v1047 = vpop.f32.mrf.mxu0
        %v1048 = vadd.f32 %v965, %v1047
        %1049 = vmatmul.f32.gmra.mxu0 %v986
        %v1050 = vpop.f32.mrf.mxu0
        %v1051 = vadd.f32 %v965, %v1050
        %1052 = vmatmul.f32.gmra.mxu0 %v989
        %v1053 = vpop.f32.mrf.mxu0
        %v1054 = vadd.f32 %v965, %v1053
        %1055 = vmatmul.f32.gmra.mxu0 %v992
        %v1056 = vpop.f32.mrf.mxu0
        %v1057 = vadd.f32 %v965, %v1056
        %1058 = vmatmul.f32.gmra.mxu0 %v995
        %v1059 = vpop.f32.mrf.mxu0
        %v1060 = vadd.f32 %v965, %v1059
        %1061 = vmatmul.f32.gmra.mxu0 %v998
        %v1062 = vpop.f32.mrf.mxu0
        %v1063 = vadd.f32 %v965, %v1062
        %1064 = vmatmul.f32.gmra.mxu0 %v1001
        %v1065 = vpop.f32.mrf.mxu0
        %v1066 = vadd.f32 %v965, %v1065
        %1067 = vmatmul.f32.gmra.mxu0 %v1004
        %v1068 = vpop.f32.mrf.mxu0
        %v1069 = vadd.f32 %v965, %v1068
        %1070 = vmatmul.f32.gmra.mxu0 %v1007
        %v1071 = vpop.f32.mrf.mxu0
        %v1072 = vadd.f32 %v965, %v1071
        %1073 = vmatmul.f32.gmra.mxu0 %v1010
        %v1074 = vpop.f32.mrf.mxu0
        %v1075 = vadd.f32 %v965, %v1074
        %1076 = vmatmul.f32.gmra.mxu0 %v1013
        %v1077 = vpop.f32.mrf.mxu0
        %v1078 = vadd.f32 %v965, %v1077
        %1079 = vdwg.mxu0
        %1081 = vset.pattern.permute.xlu0 0
        %1082 = vperm.xlu0 %1081, %v717
        %v1083 = vpop.permute.xlu0 %1082
        %1086 = vset.pattern.permute.xlu0 0
        %1087 = vperm.xlu0 %1086, %v732
        %v1088 = vpop.permute.xlu0 %1087
        %1091 = vset.pattern.permute.xlu0 0
        %1092 = vperm.xlu0 %1091, %v747
        %v1093 = vpop.permute.xlu0 %1092
        %1096 = vset.pattern.permute.xlu0 0
        %1097 = vperm.xlu0 %1096, %v762
        %v1098 = vpop.permute.xlu0 %1097
        %1101 = vset.pattern.permute.xlu0 0
        %1102 = vperm.xlu0 %1101, %v777
        %v1103 = vpop.permute.xlu0 %1102
        %1106 = vset.pattern.permute.xlu0 0
        %1107 = vperm.xlu0 %1106, %v792
        %v1108 = vpop.permute.xlu0 %1107
        %1111 = vset.pattern.permute.xlu0 0
        %1112 = vperm.xlu0 %1111, %v807
        %v1113 = vpop.permute.xlu0 %1112
        %1116 = vset.pattern.permute.xlu0 0
        %1117 = vperm.xlu0 %1116, %v822
        %v1118 = vpop.permute.xlu0 %1117
        %1121 = vset.pattern.permute.xlu0 0
        %1122 = vperm.xlu0 %1121, %v837
        %v1123 = vpop.permute.xlu0 %1122
        %1126 = vset.pattern.permute.xlu0 0
        %1127 = vperm.xlu0 %1126, %v852
        %v1128 = vpop.permute.xlu0 %1127
        %1131 = vset.pattern.permute.xlu0 0
        %1132 = vperm.xlu0 %1131, %v867
        %v1133 = vpop.permute.xlu0 %1132
        %1136 = vset.pattern.permute.xlu0 0
        %1137 = vperm.xlu0 %1136, %v882
        %v1138 = vpop.permute.xlu0 %1137
        %1141 = vset.pattern.permute.xlu0 0
        %1142 = vperm.xlu0 %1141, %v897
        %v1143 = vpop.permute.xlu0 %1142
        %1146 = vset.pattern.permute.xlu0 0
        %1147 = vperm.xlu0 %1146, %v912
        %v1148 = vpop.permute.xlu0 %1147
        %1151 = vset.pattern.permute.xlu0 0
        %1152 = vperm.xlu0 %1151, %v927
        %v1153 = vpop.permute.xlu0 %1152
        %1156 = vset.pattern.permute.xlu0 0
        %1157 = vperm.xlu0 %1156, %v942
        %v1158 = vpop.permute.xlu0 %1157
        %v1160 = vmul.f32 %v1083, %v1033
        %v1161 = vmul.f32 %v1088, %v1036
        %v1162 = vmul.f32 %v1093, %v1039
        %v1163 = vmul.f32 %v1098, %v1042
        %v1164 = vmul.f32 %v1103, %v1045
        %v1165 = vmul.f32 %v1108, %v1048
        %v1166 = vmul.f32 %v1113, %v1051
        %v1167 = vmul.f32 %v1118, %v1054
        %v1168 = vmul.f32 %v1123, %v1057
        %v1169 = vmul.f32 %v1128, %v1060
        %v1170 = vmul.f32 %v1133, %v1063
        %v1171 = vmul.f32 %v1138, %v1066
        %v1172 = vmul.f32 %v1143, %v1069
        %v1173 = vmul.f32 %v1148, %v1072
        %v1174 = vmul.f32 %v1153, %v1075
        %v1175 = vmul.f32 %v1158, %v1078
        %1176 = vst [vmem:[#allocation2] sm:$0xff] %v1160
        %1177 = vst [vmem:[#allocation2 + $0x18] sm:$0xff] %v1161
        %1178 = vst [vmem:[#allocation2 + $0x30] sm:$0xff] %v1162
        %1179 = vst [vmem:[#allocation2 + $0x48] sm:$0xff] %v1163
        %1180 = vst [vmem:[#allocation2 + $0x60] sm:$0xff] %v1164
        %1181 = vst [vmem:[#allocation2 + $0x78] sm:$0xff] %v1165
        %1182 = vst [vmem:[#allocation2 + $0x90] sm:$0xff] %v1166
        %1183 = vst [vmem:[#allocation2 + $0xa8] sm:$0xff] %v1167
        %1184 = vst [vmem:[#allocation2 + $0xc0] sm:$0xff] %v1168
        %1185 = vst [vmem:[#allocation2 + $0xd8] sm:$0xff] %v1169
        %1186 = vst [vmem:[#allocation2 + $0xf0] sm:$0xff] %v1170
        %1187 = vst [vmem:[#allocation2 + $0x108] sm:$0xff] %v1171
        %1188 = vst [vmem:[#allocation2 + $0x120] sm:$0xff] %v1172
        %1189 = vst [vmem:[#allocation2 + $0x138] sm:$0xff] %v1173
        %1190 = vst [vmem:[#allocation2 + $0x150] sm:$0xff] %v1174
        %1191 = vst [vmem:[#allocation2 + $0x168] sm:$0xff] %v1175
        %v1192 = vsub.f32 1.0, %v717
        %v1193 = vsub.f32 1.0, %v732
        %v1194 = vsub.f32 1.0, %v747
        %v1195 = vsub.f32 1.0, %v762
        %v1196 = vsub.f32 1.0, %v777
        %v1197 = vsub.f32 1.0, %v792
        %v1198 = vsub.f32 1.0, %v807
        %v1199 = vsub.f32 1.0, %v822
        %v1200 = vsub.f32 1.0, %v837
        %v1201 = vsub.f32 1.0, %v852
        %v1202 = vsub.f32 1.0, %v867
        %v1203 = vsub.f32 1.0, %v882
        %v1204 = vsub.f32 1.0, %v897
        %v1205 = vsub.f32 1.0, %v912
        %v1206 = vsub.f32 1.0, %v927
        %v1207 = vsub.f32 1.0, %v942
        %1209 = vset.pattern.permute.xlu0 0
        %1210 = vperm.xlu0 %1209, %v1192
        %v1211 = vpop.permute.xlu0 %1210
        %1214 = vset.pattern.permute.xlu0 0
        %1215 = vperm.xlu0 %1214, %v1193
        %v1216 = vpop.permute.xlu0 %1215
        %1219 = vset.pattern.permute.xlu0 0
        %1220 = vperm.xlu0 %1219, %v1194
        %v1221 = vpop.permute.xlu0 %1220
        %1224 = vset.pattern.permute.xlu0 0
        %1225 = vperm.xlu0 %1224, %v1195
        %v1226 = vpop.permute.xlu0 %1225
        %1229 = vset.pattern.permute.xlu0 0
        %1230 = vperm.xlu0 %1229, %v1196
        %v1231 = vpop.permute.xlu0 %1230
        %1234 = vset.pattern.permute.xlu0 0
        %1235 = vperm.xlu0 %1234, %v1197
        %v1236 = vpop.permute.xlu0 %1235
        %1239 = vset.pattern.permute.xlu0 0
        %1240 = vperm.xlu0 %1239, %v1198
        %v1241 = vpop.permute.xlu0 %1240
        %1244 = vset.pattern.permute.xlu0 0
        %1245 = vperm.xlu0 %1244, %v1199
        %v1246 = vpop.permute.xlu0 %1245
        %1249 = vset.pattern.permute.xlu0 0
        %1250 = vperm.xlu0 %1249, %v1200
        %v1251 = vpop.permute.xlu0 %1250
        %1254 = vset.pattern.permute.xlu0 0
        %1255 = vperm.xlu0 %1254, %v1201
        %v1256 = vpop.permute.xlu0 %1255
        %1259 = vset.pattern.permute.xlu0 0
        %1260 = vperm.xlu0 %1259, %v1202
        %v1261 = vpop.permute.xlu0 %1260
        %1264 = vset.pattern.permute.xlu0 0
        %1265 = vperm.xlu0 %1264, %v1203
        %v1266 = vpop.permute.xlu0 %1265
        %1269 = vset.pattern.permute.xlu0 0
        %1270 = vperm.xlu0 %1269, %v1204
        %v1271 = vpop.permute.xlu0 %1270
        %1274 = vset.pattern.permute.xlu0 0
        %1275 = vperm.xlu0 %1274, %v1205
        %v1276 = vpop.permute.xlu0 %1275
        %1279 = vset.pattern.permute.xlu0 0
        %1280 = vperm.xlu0 %1279, %v1206
        %v1281 = vpop.permute.xlu0 %1280
        %1284 = vset.pattern.permute.xlu0 0
        %1285 = vperm.xlu0 %1284, %v1207
        %v1286 = vpop.permute.xlu0 %1285
        %v1288 = vmul.f32 %v1211, %v1033
        %v1289 = vmul.f32 %v1216, %v1036
        %v1290 = vmul.f32 %v1221, %v1039
        %v1291 = vmul.f32 %v1226, %v1042
        %v1292 = vmul.f32 %v1231, %v1045
        %v1293 = vmul.f32 %v1236, %v1048
        %v1294 = vmul.f32 %v1241, %v1051
        %v1295 = vmul.f32 %v1246, %v1054
        %v1296 = vmul.f32 %v1251, %v1057
        %v1297 = vmul.f32 %v1256, %v1060
        %v1298 = vmul.f32 %v1261, %v1063
        %v1299 = vmul.f32 %v1266, %v1066
        %v1300 = vmul.f32 %v1271, %v1069
        %v1301 = vmul.f32 %v1276, %v1072
        %v1302 = vmul.f32 %v1281, %v1075
        %v1303 = vmul.f32 %v1286, %v1078
        %1304 = vst [vmem:[#allocation2 + $0x8] sm:$0xff] %v1288
        %1305 = vst [vmem:[#allocation2 + $0x20] sm:$0xff] %v1289
        %1306 = vst [vmem:[#allocation2 + $0x38] sm:$0xff] %v1290
        %1307 = vst [vmem:[#allocation2 + $0x50] sm:$0xff] %v1291
        %1308 = vst [vmem:[#allocation2 + $0x68] sm:$0xff] %v1292
        %1309 = vst [vmem:[#allocation2 + $0x80] sm:$0xff] %v1293
        %1310 = vst [vmem:[#allocation2 + $0x98] sm:$0xff] %v1294
        %1311 = vst [vmem:[#allocation2 + $0xb0] sm:$0xff] %v1295
        %1312 = vst [vmem:[#allocation2 + $0xc8] sm:$0xff] %v1296
        %1313 = vst [vmem:[#allocation2 + $0xe0] sm:$0xff] %v1297
        %1314 = vst [vmem:[#allocation2 + $0xf8] sm:$0xff] %v1298
        %1315 = vst [vmem:[#allocation2 + $0x110] sm:$0xff] %v1299
        %1316 = vst [vmem:[#allocation2 + $0x128] sm:$0xff] %v1300
        %1317 = vst [vmem:[#allocation2 + $0x140] sm:$0xff] %v1301
        %1318 = vst [vmem:[#allocation2 + $0x158] sm:$0xff] %v1302
        %1319 = vst [vmem:[#allocation2 + $0x170] sm:$0xff] %v1303
        %v1320 = vlaneseq
        %v1321 = vand.u32 %v1320, 127
        %vm1322 = vcmp.eq.s32.totalorder %v1321, 0
        %v1323 = vsel %vm1322, %v1083, 0.0
        %v1324 = vsel %vm1322, %v1088, 0.0
        %v1325 = vsel %vm1322, %v1093, 0.0
        %v1326 = vsel %vm1322, %v1098, 0.0
        %v1327 = vsel %vm1322, %v1103, 0.0
        %v1328 = vsel %vm1322, %v1108, 0.0
        %v1329 = vsel %vm1322, %v1113, 0.0
        %v1330 = vsel %vm1322, %v1118, 0.0
        %v1331 = vsel %vm1322, %v1123, 0.0
        %v1332 = vsel %vm1322, %v1128, 0.0
        %v1333 = vsel %vm1322, %v1133, 0.0
        %v1334 = vsel %vm1322, %v1138, 0.0
        %v1335 = vsel %vm1322, %v1143, 0.0
        %v1336 = vsel %vm1322, %v1148, 0.0
        %v1337 = vsel %vm1322, %v1153, 0.0
        %v1338 = vsel %vm1322, %v1158, 0.0
        %vm1339 = vcmp.eq.s32.totalorder %v1321, 1
        %v1340 = vsel %vm1339, %v1211, 0.0
        %v1341 = vsel %vm1339, %v1216, 0.0
        %v1342 = vsel %vm1339, %v1221, 0.0
        %v1343 = vsel %vm1339, %v1226, 0.0
        %v1344 = vsel %vm1339, %v1231, 0.0
        %v1345 = vsel %vm1339, %v1236, 0.0
        %v1346 = vsel %vm1339, %v1241, 0.0
        %v1347 = vsel %vm1339, %v1246, 0.0
        %v1348 = vsel %vm1339, %v1251, 0.0
        %v1349 = vsel %vm1339, %v1256, 0.0
        %v1350 = vsel %vm1339, %v1261, 0.0
        %v1351 = vsel %vm1339, %v1266, 0.0
        %v1352 = vsel %vm1339, %v1271, 0.0
        %v1353 = vsel %vm1339, %v1276, 0.0
        %v1354 = vsel %vm1339, %v1281, 0.0
        %v1355 = vsel %vm1339, %v1286, 0.0
        %v1356 = vadd.f32 %v1323, %v1340
        %v1357 = vadd.f32 %v1324, %v1341
        %v1358 = vadd.f32 %v1325, %v1342
        %v1359 = vadd.f32 %v1326, %v1343
        %v1360 = vadd.f32 %v1327, %v1344
        %v1361 = vadd.f32 %v1328, %v1345
        %v1362 = vadd.f32 %v1329, %v1346
        %v1363 = vadd.f32 %v1330, %v1347
        %v1364 = vadd.f32 %v1331, %v1348
        %v1365 = vadd.f32 %v1332, %v1349
        %v1366 = vadd.f32 %v1333, %v1350
        %v1367 = vadd.f32 %v1334, %v1351
        %v1368 = vadd.f32 %v1335, %v1352
        %v1369 = vadd.f32 %v1336, %v1353
        %v1370 = vadd.f32 %v1337, %v1354
        %v1371 = vadd.f32 %v1338, %v1355
        %vm1372 = vcmp.eq.s32.totalorder %v1321, 2
        %vm1373 = vcmp.gt.f32.partialorder %v717, 0.0
        %vm1374 = vcmp.gt.f32.partialorder %v732, 0.0
        %vm1375 = vcmp.gt.f32.partialorder %v747, 0.0
        %vm1376 = vcmp.gt.f32.partialorder %v762, 0.0
        %vm1377 = vcmp.gt.f32.partialorder %v777, 0.0
        %vm1378 = vcmp.gt.f32.partialorder %v792, 0.0
        %vm1379 = vcmp.gt.f32.partialorder %v807, 0.0
        %vm1380 = vcmp.gt.f32.partialorder %v822, 0.0
        %vm1381 = vcmp.gt.f32.partialorder %v837, 0.0
        %vm1382 = vcmp.gt.f32.partialorder %v852, 0.0
        %vm1383 = vcmp.gt.f32.partialorder %v867, 0.0
        %vm1384 = vcmp.gt.f32.partialorder %v882, 0.0
        %vm1385 = vcmp.gt.f32.partialorder %v897, 0.0
        %vm1386 = vcmp.gt.f32.partialorder %v912, 0.0
        %vm1387 = vcmp.gt.f32.partialorder %v927, 0.0
        %vm1388 = vcmp.gt.f32.partialorder %v942, 0.0
        %v1389 = vsel %vm1373, 1, 0
        %v1390 = vsel %vm1374, 1, 0
        %v1391 = vsel %vm1375, 1, 0
        %v1392 = vsel %vm1376, 1, 0
        %v1393 = vsel %vm1377, 1, 0
        %v1394 = vsel %vm1378, 1, 0
        %v1395 = vsel %vm1379, 1, 0
        %v1396 = vsel %vm1380, 1, 0
        %v1397 = vsel %vm1381, 1, 0
        %v1398 = vsel %vm1382, 1, 0
        %v1399 = vsel %vm1383, 1, 0
        %v1400 = vsel %vm1384, 1, 0
        %v1401 = vsel %vm1385, 1, 0
        %v1402 = vsel %vm1386, 1, 0
        %v1403 = vsel %vm1387, 1, 0
        %v1404 = vsel %vm1388, 1, 0
        %v1405 = vcvt.s32.f32 %v1389
        %v1406 = vcvt.s32.f32 %v1390
        %v1407 = vcvt.s32.f32 %v1391
        %v1408 = vcvt.s32.f32 %v1392
        %v1409 = vcvt.s32.f32 %v1393
        %v1410 = vcvt.s32.f32 %v1394
        %v1411 = vcvt.s32.f32 %v1395
        %v1412 = vcvt.s32.f32 %v1396
        %v1413 = vcvt.s32.f32 %v1397
        %v1414 = vcvt.s32.f32 %v1398
        %v1415 = vcvt.s32.f32 %v1399
        %v1416 = vcvt.s32.f32 %v1400
        %v1417 = vcvt.s32.f32 %v1401
        %v1418 = vcvt.s32.f32 %v1402
        %v1419 = vcvt.s32.f32 %v1403
        %v1420 = vcvt.s32.f32 %v1404
        %1422 = vset.pattern.permute.xlu0 0
        %1423 = vperm.xlu0 %1422, %v1405
        %v1424 = vpop.permute.xlu0 %1423
        %1427 = vset.pattern.permute.xlu0 0
        %1428 = vperm.xlu0 %1427, %v1406
        %v1429 = vpop.permute.xlu0 %1428
        %1432 = vset.pattern.permute.xlu0 0
        %1433 = vperm.xlu0 %1432, %v1407
        %v1434 = vpop.permute.xlu0 %1433
        %1437 = vset.pattern.permute.xlu0 0
        %1438 = vperm.xlu0 %1437, %v1408
        %v1439 = vpop.permute.xlu0 %1438
        %1442 = vset.pattern.permute.xlu0 0
        %1443 = vperm.xlu0 %1442, %v1409
        %v1444 = vpop.permute.xlu0 %1443
        %1447 = vset.pattern.permute.xlu0 0
        %1448 = vperm.xlu0 %1447, %v1410
        %v1449 = vpop.permute.xlu0 %1448
        %1452 = vset.pattern.permute.xlu0 0
        %1453 = vperm.xlu0 %1452, %v1411
        %v1454 = vpop.permute.xlu0 %1453
        %1457 = vset.pattern.permute.xlu0 0
        %1458 = vperm.xlu0 %1457, %v1412
        %v1459 = vpop.permute.xlu0 %1458
        %1462 = vset.pattern.permute.xlu0 0
        %1463 = vperm.xlu0 %1462, %v1413
        %v1464 = vpop.permute.xlu0 %1463
        %1467 = vset.pattern.permute.xlu0 0
        %1468 = vperm.xlu0 %1467, %v1414
        %v1469 = vpop.permute.xlu0 %1468
        %1472 = vset.pattern.permute.xlu0 0
        %1473 = vperm.xlu0 %1472, %v1415
        %v1474 = vpop.permute.xlu0 %1473
        %1477 = vset.pattern.permute.xlu0 0
        %1478 = vperm.xlu0 %1477, %v1416
        %v1479 = vpop.permute.xlu0 %1478
        %1482 = vset.pattern.permute.xlu0 0
        %1483 = vperm.xlu0 %1482, %v1417
        %v1484 = vpop.permute.xlu0 %1483
        %1487 = vset.pattern.permute.xlu0 0
        %1488 = vperm.xlu0 %1487, %v1418
        %v1489 = vpop.permute.xlu0 %1488
        %1492 = vset.pattern.permute.xlu0 0
        %1493 = vperm.xlu0 %1492, %v1419
        %v1494 = vpop.permute.xlu0 %1493
        %1497 = vset.pattern.permute.xlu0 0
        %1498 = vperm.xlu0 %1497, %v1420
        %v1499 = vpop.permute.xlu0 %1498
        %v1501 = vsel %vm1372, %v1424, 0.0
        %v1502 = vsel %vm1372, %v1429, 0.0
        %v1503 = vsel %vm1372, %v1434, 0.0
        %v1504 = vsel %vm1372, %v1439, 0.0
        %v1505 = vsel %vm1372, %v1444, 0.0
        %v1506 = vsel %vm1372, %v1449, 0.0
        %v1507 = vsel %vm1372, %v1454, 0.0
        %v1508 = vsel %vm1372, %v1459, 0.0
        %v1509 = vsel %vm1372, %v1464, 0.0
        %v1510 = vsel %vm1372, %v1469, 0.0
        %v1511 = vsel %vm1372, %v1474, 0.0
        %v1512 = vsel %vm1372, %v1479, 0.0
        %v1513 = vsel %vm1372, %v1484, 0.0
        %v1514 = vsel %vm1372, %v1489, 0.0
        %v1515 = vsel %vm1372, %v1494, 0.0
        %v1516 = vsel %vm1372, %v1499, 0.0
        %v1517 = vadd.f32 %v1356, %v1501
        %v1518 = vadd.f32 %v1357, %v1502
        %v1519 = vadd.f32 %v1358, %v1503
        %v1520 = vadd.f32 %v1359, %v1504
        %v1521 = vadd.f32 %v1360, %v1505
        %v1522 = vadd.f32 %v1361, %v1506
        %v1523 = vadd.f32 %v1362, %v1507
        %v1524 = vadd.f32 %v1363, %v1508
        %v1525 = vadd.f32 %v1364, %v1509
        %v1526 = vadd.f32 %v1365, %v1510
        %v1527 = vadd.f32 %v1366, %v1511
        %v1528 = vadd.f32 %v1367, %v1512
        %v1529 = vadd.f32 %v1368, %v1513
        %v1530 = vadd.f32 %v1369, %v1514
        %v1531 = vadd.f32 %v1370, %v1515
        %v1532 = vadd.f32 %v1371, %v1516
        %vm1533 = vcmp.eq.s32.totalorder %v1321, 3
        %v1534 = vsel %vm1533, 1, 0
        %v1535 = vcvt.s32.f32 %v1534
        %v1536 = vadd.f32 %v1517, %v1535
        %v1537 = vadd.f32 %v1518, %v1535
        %v1538 = vadd.f32 %v1519, %v1535
        %v1539 = vadd.f32 %v1520, %v1535
        %v1540 = vadd.f32 %v1521, %v1535
        %v1541 = vadd.f32 %v1522, %v1535
        %v1542 = vadd.f32 %v1523, %v1535
        %v1543 = vadd.f32 %v1524, %v1535
        %v1544 = vadd.f32 %v1525, %v1535
        %v1545 = vadd.f32 %v1526, %v1535
        %v1546 = vadd.f32 %v1527, %v1535
        %v1547 = vadd.f32 %v1528, %v1535
        %v1548 = vadd.f32 %v1529, %v1535
        %v1549 = vadd.f32 %v1530, %v1535
        %v1550 = vadd.f32 %v1531, %v1535
        %v1551 = vadd.f32 %v1532, %v1535
        %1552 = vst [vmem:[#allocation2 + $0x10] sm:$0xff] %v1536
        %1553 = vst [vmem:[#allocation2 + $0x28] sm:$0xff] %v1537
        %1554 = vst [vmem:[#allocation2 + $0x40] sm:$0xff] %v1538
        %1555 = vst [vmem:[#allocation2 + $0x58] sm:$0xff] %v1539
        %1556 = vst [vmem:[#allocation2 + $0x70] sm:$0xff] %v1540
        %1557 = vst [vmem:[#allocation2 + $0x88] sm:$0xff] %v1541
        %1558 = vst [vmem:[#allocation2 + $0xa0] sm:$0xff] %v1542
        %1559 = vst [vmem:[#allocation2 + $0xb8] sm:$0xff] %v1543
        %1560 = vst [vmem:[#allocation2 + $0xd0] sm:$0xff] %v1544
        %1561 = vst [vmem:[#allocation2 + $0xe8] sm:$0xff] %v1545
        %1562 = vst [vmem:[#allocation2 + $0x100] sm:$0xff] %v1546
        %1563 = vst [vmem:[#allocation2 + $0x118] sm:$0xff] %v1547
        %1564 = vst [vmem:[#allocation2 + $0x130] sm:$0xff] %v1548
        %1565 = vst [vmem:[#allocation2 + $0x148] sm:$0xff] %v1549
        %1566 = vst [vmem:[#allocation2 + $0x160] sm:$0xff] %v1550
        %1567 = vst [vmem:[#allocation2 + $0x178] sm:$0xff] %v1551
        %v1568 = vld [vmem:[#allocation3] sm:$0xf]
        %v1569 = vld [vmem:[%s386] sm:$0x1]
        %v1570 = vperm.slane %v1569, 0
        %vm1571 = vcmp.eq.s32.totalorder %v1568, %v1570
        %v1572 = vsel %vm1571, 1, 0
        %v1573 = vcvt.s32.f32 %v1572
        %v1574 = vld [vmem:[#allocation2] sm:$0xff]
        %v1575 = vld [vmem:[#allocation2 + $0x8] sm:$0xff]
        %v1576 = vld [vmem:[#allocation2 + $0x10] sm:$0xff]
        %v1577 = vld [vmem:[#allocation2 + $0x18] sm:$0xff]
        %v1578 = vld [vmem:[#allocation2 + $0x20] sm:$0xff]
        %v1579 = vld [vmem:[#allocation2 + $0x28] sm:$0xff]
        %v1580 = vld [vmem:[#allocation2 + $0x30] sm:$0xff]
        %v1581 = vld [vmem:[#allocation2 + $0x38] sm:$0xff]
        %v1582 = vld [vmem:[#allocation2 + $0x40] sm:$0xff]
        %v1583 = vld [vmem:[#allocation2 + $0x48] sm:$0xff]
        %v1584 = vld [vmem:[#allocation2 + $0x50] sm:$0xff]
        %v1585 = vld [vmem:[#allocation2 + $0x58] sm:$0xff]
        %v1586 = vld [vmem:[#allocation2 + $0x60] sm:$0xff]
        %v1587 = vld [vmem:[#allocation2 + $0x68] sm:$0xff]
        %v1588 = vld [vmem:[#allocation2 + $0x70] sm:$0xff]
        %v1589 = vld [vmem:[#allocation2 + $0x78] sm:$0xff]
        %v1590 = vld [vmem:[#allocation2 + $0x80] sm:$0xff]
        %v1591 = vld [vmem:[#allocation2 + $0x88] sm:$0xff]
        %v1592 = vld [vmem:[#allocation2 + $0x90] sm:$0xff]
        %v1593 = vld [vmem:[#allocation2 + $0x98] sm:$0xff]
        %v1594 = vld [vmem:[#allocation2 + $0xa0] sm:$0xff]
        %v1595 = vld [vmem:[#allocation2 + $0xa8] sm:$0xff]
        %v1596 = vld [vmem:[#allocation2 + $0xb0] sm:$0xff]
        %v1597 = vld [vmem:[#allocation2 + $0xb8] sm:$0xff]
        %v1598 = vld [vmem:[#allocation2 + $0xc0] sm:$0xff]
        %v1599 = vld [vmem:[#allocation2 + $0xc8] sm:$0xff]
        %v1600 = vld [vmem:[#allocation2 + $0xd0] sm:$0xff]
        %v1601 = vld [vmem:[#allocation2 + $0xd8] sm:$0xff]
        %v1602 = vld [vmem:[#allocation2 + $0xe0] sm:$0xff]
        %v1603 = vld [vmem:[#allocation2 + $0xe8] sm:$0xff]
        %v1604 = vld [vmem:[#allocation2 + $0xf0] sm:$0xff]
        %v1605 = vld [vmem:[#allocation2 + $0xf8] sm:$0xff]
        %v1606 = vld [vmem:[#allocation2 + $0x100] sm:$0xff]
        %v1607 = vld [vmem:[#allocation2 + $0x108] sm:$0xff]
        %v1608 = vld [vmem:[#allocation2 + $0x110] sm:$0xff]
        %v1609 = vld [vmem:[#allocation2 + $0x118] sm:$0xff]
        %v1610 = vld [vmem:[#allocation2 + $0x120] sm:$0xff]
        %v1611 = vld [vmem:[#allocation2 + $0x128] sm:$0xff]
        %v1612 = vld [vmem:[#allocation2 + $0x130] sm:$0xff]
        %v1613 = vld [vmem:[#allocation2 + $0x138] sm:$0xff]
        %v1614 = vld [vmem:[#allocation2 + $0x140] sm:$0xff]
        %v1615 = vld [vmem:[#allocation2 + $0x148] sm:$0xff]
        %v1616 = vld [vmem:[#allocation2 + $0x150] sm:$0xff]
        %v1617 = vld [vmem:[#allocation2 + $0x158] sm:$0xff]
        %v1618 = vld [vmem:[#allocation2 + $0x160] sm:$0xff]
        %v1619 = vld [vmem:[#allocation2 + $0x168] sm:$0xff]
        %v1620 = vld [vmem:[#allocation2 + $0x170] sm:$0xff]
        %v1621 = vld [vmem:[#allocation2 + $0x178] sm:$0xff]
        %1622 = vmatpush.msra.mxu0 %v1619
        %1623 = vmatpush.msra.mxu0 %v1616
        %1624 = vmatpush.msra.mxu0 %v1613
        %1625 = vmatpush.msra.mxu0 %v1610
        %1626 = vmatpush.msra.mxu0 %v1607
        %1627 = vmatpush.msra.mxu0 %v1604
        %1628 = vmatpush.msra.mxu0 %v1601
        %1629 = vmatpush.msra.mxu0 %v1598
        %1630 = vmatpush.msra.mxu0 %v1595
        %1631 = vmatpush.msra.mxu0 %v1592
        %1632 = vmatpush.msra.mxu0 %v1589
        %1633 = vmatpush.msra.mxu0 %v1586
        %1634 = vmatpush.msra.mxu0 %v1583
        %1635 = vmatpush.msra.mxu0 %v1580
        %1636 = vmatpush.msra.mxu0 %v1577
        %1637 = vmatpush.msra.mxu0 %v1574
        %1638 = vmatmul.f32.gmra.mxu0 %v1573
        %v1639 = vpop.f32.mrf.mxu0
        %v1640 = vadd.f32 0.0, %v1639
        %1641 = vdwg.mxu0
        %1642 = vmatpush.msra.mxu0 %v1620
        %1643 = vmatpush.msra.mxu0 %v1617
        %1644 = vmatpush.msra.mxu0 %v1614
        %1645 = vmatpush.msra.mxu0 %v1611
        %1646 = vmatpush.msra.mxu0 %v1608
        %1647 = vmatpush.msra.mxu0 %v1605
        %1648 = vmatpush.msra.mxu0 %v1602
        %1649 = vmatpush.msra.mxu0 %v1599
        %1650 = vmatpush.msra.mxu0 %v1596
        %1651 = vmatpush.msra.mxu0 %v1593
        %1652 = vmatpush.msra.mxu0 %v1590
        %1653 = vmatpush.msra.mxu0 %v1587
        %1654 = vmatpush.msra.mxu0 %v1584
        %1655 = vmatpush.msra.mxu0 %v1581
        %1656 = vmatpush.msra.mxu0 %v1578
        %1657 = vmatpush.msra.mxu0 %v1575
        %1658 = vmatmul.f32.gmra.mxu0 %v1573
        %v1659 = vpop.f32.mrf.mxu0
        %v1660 = vadd.f32 0.0, %v1659
        %1661 = vdwg.mxu0
        %1662 = vmatpush.msra.mxu0 %v1621
        %1663 = vmatpush.msra.mxu0 %v1618
        %1664 = vmatpush.msra.mxu0 %v1615
        %1665 = vmatpush.msra.mxu0 %v1612
        %1666 = vmatpush.msra.mxu0 %v1609
        %1667 = vmatpush.msra.mxu0 %v1606
        %1668 = vmatpush.msra.mxu0 %v1603
        %1669 = vmatpush.msra.mxu0 %v1600
        %1670 = vmatpush.msra.mxu0 %v1597
        %1671 = vmatpush.msra.mxu0 %v1594
        %1672 = vmatpush.msra.mxu0 %v1591
        %1673 = vmatpush.msra.mxu0 %v1588
        %1674 = vmatpush.msra.mxu0 %v1585
        %1675 = vmatpush.msra.mxu0 %v1582
        %1676 = vmatpush.msra.mxu0 %v1579
        %1677 = vmatpush.msra.mxu0 %v1576
        %1678 = vmatmul.f32.gmra.mxu0 %v1573
        %v1679 = vpop.f32.mrf.mxu0
        %v1680 = vadd.f32 0.0, %v1679
        %1681 = vdwg.mxu0
        %v1682 = vld [vmem:[%s382] sm:$0xff]
        %v1683 = vld [vmem:[%s382 + $0x8] sm:$0xf]
        %v1686 = vrot.slane %v1660, 4
        %vm1687 = vcmask 1043456
        %v1688 = vsel %vm1687, %v1640, %v1686
        %v1690 = vadd.f32 %v1682, %v1688
        %v1691 = vadd.f32 %v1683, %v1680
        %1692 = vst [vmem:[%s382] sm:$0xff] %v1690
        %1693 = vst [vmem:[%s382 + $0x8] sm:$0xf] %v1691
        %s1694 = sand.u32 %s255, 1
        %s1695 = scalar_lea.sflag [#allocation6], %s1694
        %s1696 = sand.u32 %s255, 1
        %s1697 = smul.addr %s1696, 12
        %s1698 = scalar_lea.vmem [#allocation5], %s1697
        // Predicated region
        $region61: #{tpu_custom_call.1} parent=55 // pred_check
          %p1699 = pneg %p265
        $region62: #{tpu_custom_call.1} parent=55 // pred_check_branch
          %1701 = sbr.rel (%p1699) target = $region64
        $region63: #{tpu_custom_call.1} parent=55 // pred_region
          %1703 = vsyncadd %s1695, 0
          %s1704 = smul.addr %s29, 3
          %s1705 = smul.addr %s1704, 4
          %s1706 = scalar_lea.hbm %s9, %s1705
          %s1708 = sshll.u32 %s1698, 4
          %s1709 = int_to_ptr.vmem [resolvable:$true] %s1708
          %s1710 = sshll.u32 %s1706, 4
          %s1711 = int_to_ptr.hbm [resolvable:$true] %s1710
          %1713 = dma.vmem_to_hbm [thread:$0]  %s1709, 192, %s1711, %s1695
        $region64: #{tpu_custom_call.1} parent=55 // pred_fallthru
          _
      $region56: #{tpu_custom_call.1} parent=5 // pred_fallthru
        _
      %p1714 = scmp.le.s32.totalorder 2, %s20
      // Predicated region
      $region65: #{tpu_custom_call.1} parent=5 // pred_check
        %p1715 = pneg %p1714
      $region66: #{tpu_custom_call.1} parent=5 // pred_check_branch
        %1717 = sbr.rel (%p1715) target = $region68
      $region67: #{tpu_custom_call.1} parent=5 // pred_region
        %s1718 = ssub.s32 %s20, 2
        // Predicated region
        $region69: #{tpu_custom_call.1} parent=67 // pred_check
          %p1719 = pneg %p271
        $region70: #{tpu_custom_call.1} parent=67 // pred_check_branch
          %1721 = sbr.rel (%p1719) target = $region72
        $region71: #{tpu_custom_call.1} parent=67 // pred_region
          %s1722 = sand.u32 %s256, 1
          %s1723 = scalar_lea.sflag [#allocation6], %s1722
          %s1724 = sand.u32 %s256, 1
          %s1725 = smul.addr %s1724, 12
          %s1726 = scalar_lea.vmem [#allocation5], %s1725
          %1728 = dma.done %s1723, 192
        $region72: #{tpu_custom_call.1} parent=67 // pred_fallthru
          _
      $region68: #{tpu_custom_call.1} parent=5 // pred_fallthru
        _
    $region6: #{tpu_custom_call.1} parent=1 // loop_footer
      %s24 = sadd.s32 1, %s20
    $region7: #{tpu_custom_call.1} parent=1 // loop_footer_branch
      %19 = sbr.rel target = $region3
    $region8: #{tpu_custom_call.1} parent=1 // loop_exit
      _
    %1729 = vsyncpa [#allocation6], 1
    %s1730 = scalar_lea.sflag [#allocation6], 1
    %1731 = vsyncpa %s1730, 1

</llo_original>
